<compile_context>
chip_gen: v5e
topology: v5e:2x2
jax: 0.10.0
libtpu: 0.0.40
codegen_flags: <defaults>
</compile_context>

<pallas_src>
import math

import jax
import jax.numpy as jnp
import numpy as np
from jax.experimental import pallas as pl
from jax.experimental.pallas import tpu as pltpu

# ---------------- config (small, consistent with the module) -----------------
VOCAB = 128          # vocab_size
BLOCK_SIZE = 16      # block_size
N_LAYER = 2
N_HEAD = 4
N_EMBD = 32
HEAD_DIM = N_EMBD // N_HEAD
EPS = 1e-5           # torch.nn.LayerNorm default eps
NEG_INF = -1e30


# ---------------- shared math helpers (used inside kernels) ------------------
def _layernorm(x, w, b):
    mu = jnp.mean(x, axis=-1, keepdims=True)
    var = jnp.mean((x - mu) ** 2, axis=-1, keepdims=True)
    return (x - mu) * jax.lax.rsqrt(var + EPS) * w + b


def _gelu_tanh(x):
    c = math.sqrt(2.0 / math.pi)
    return 0.5 * x * (1.0 + jnp.tanh(c * (x + 0.044715 * x * x * x)))


def _mm(a, b):
    """MXU matmul: bf16 operands, f32 accumulation."""
    return jnp.dot(a.astype(jnp.bfloat16), b.astype(jnp.bfloat16),
                   preferred_element_type=jnp.float32)


# ---------------- fused whole-forward Pallas kernel ---------------------------
def _make_gpt_kernel(B, T):
    BT = B * T
    C, H, V = N_EMBD, N_HEAD, VOCAB

    def kernel(idx_ref, emb_ref, mq_ref, bias_ref,
               ln1_ref, wqkv_ref, bqkv_ref, wo_ref, bo_ref,
               ln2_ref, wfc_ref, bfc_ref, wpr_ref, bpr_ref,
               lnf_ref, wteT_ref, o_ref):
        # ---- fused token+position embedding gather (one one-hot matmul) ----
        idx = idx_ref[...]                                        # (BT, 1) i32
        tok_oh = (jax.lax.broadcasted_iota(jnp.int32, (BT, V), 1)
                  == idx).astype(jnp.float32)                     # (BT, V)
        pos_row = jax.lax.broadcasted_iota(jnp.int32, (BT, BLOCK_SIZE), 0) % T
        pos_col = jax.lax.broadcasted_iota(jnp.int32, (BT, BLOCK_SIZE), 1)
        pos_oh = (pos_col == pos_row).astype(jnp.float32)         # (BT, block)
        oh = jnp.concatenate([tok_oh, pos_oh], axis=-1)           # (BT, V+block)
        x = _mm(oh, emb_ref[...])                                 # (BT, C) f32

        mq = mq_ref[...]                                          # (H*BT, C) head mask
        bias = bias_ref[...]                                      # (H*BT, BT) causal bias

        for l in range(N_LAYER):                                  # static unroll
            # ---- ln_1 + causal self-attention (all heads in one matmul) ----
            ln1 = ln1_ref[l]                                      # (2, C)
            h = _layernorm(x, ln1[0:1], ln1[1:2])                 # (BT, C)

            qkv = _mm(h, wqkv_ref[l]) + bqkv_ref[l]               # (BT, 3C); q pre-scaled
            q = qkv[:, 0:C]
            k = qkv[:, C:2 * C]
            v = qkv[:, 2 * C:3 * C]

            # heads stacked along sublanes: one score matmul for all heads
            kT = k.T                                              # (C, BT)
            qbd = jnp.concatenate([q] * H, axis=0) * mq           # (H*BT, C)
            s = _mm(qbd, kT) + bias                               # (H*BT, BT)
            m = jnp.max(s, axis=-1, keepdims=True)
            e = jnp.exp(s - m)
            p = e * pl.reciprocal(jnp.sum(e, axis=-1, keepdims=True),
                                  approx=True)
            ys = _mm(p, v) * mq                                   # (H*BT, C)
            y = ys[0:BT]                                          # fold heads back
            for hh in range(1, H):
                y = y + ys[hh * BT:(hh + 1) * BT]                 # (BT, C)

            x = x + _mm(y, wo_ref[l]) + bo_ref[l]

            # ---- ln_2 + MLP ----
            ln2 = ln2_ref[l]
            h2 = _layernorm(x, ln2[0:1], ln2[1:2])
            g = _gelu_tanh(_mm(h2, wfc_ref[l]) + bfc_ref[l])      # (BT, 4C)
            x = x + _mm(g, wpr_ref[l]) + bpr_ref[l]

        # ---- final LayerNorm + weight-tied lm_head (lane-dense 128 output) ----
        lnf = lnf_ref[...]                                        # (2, C)
        hf = _layernorm(x, lnf[0:1], lnf[1:2])
        o_ref[...] = _mm(hf, wteT_ref[...])                       # (BT, V)

    return kernel


def _zero_index_map(nd):
    return lambda i: (0,) * nd


def gpt_forward(idx, params):
    # targets=None path of GPT.forward; returns logits.
    # TODO(synk): cross-entropy loss path (targets is not None) not implemented.
    B, T = idx.shape
    assert T <= BLOCK_SIZE
    BT = B * T
    p = params['packed']

    # Trace-time constants: block-diagonal (same-batch) causal additive bias
    # tiled per head along sublanes, and the per-head column-selection mask.
    r = np.arange(BT)
    keep = (r[:, None] // T == r[None, :] // T) & (r[None, :] <= r[:, None])
    bias = np.where(keep, 0.0, NEG_INF).astype(np.float32)        # (BT, BT)
    bias_all = jnp.asarray(np.tile(bias, (N_HEAD, 1)))            # (H*BT, BT)
    mq = jnp.asarray(
        (np.arange(N_HEAD * BT)[:, None] // BT
         == np.arange(N_EMBD)[None, :] // HEAD_DIM).astype(np.float32))  # (H*BT, C)

    args = (idx.reshape(BT, 1).astype(jnp.int32),
            p['emb'], mq, bias_all,
            p['ln1'], p['wqkv'], p['bqkv'], p['wo'], p['bo'],
            p['ln2'], p['wfc'], p['bfc'], p['wpr'], p['bpr'],
            p['lnf'], p['wteT'])
    in_specs = [pl.BlockSpec(a.shape, _zero_index_map(a.ndim)) for a in args]

    logits = pl.pallas_call(
        _make_gpt_kernel(B, T),
        out_shape=jax.ShapeDtypeStruct((BT, VOCAB), jnp.float32),
        grid=(1,),
        in_specs=in_specs,
        out_specs=pl.BlockSpec((BT, VOCAB), lambda i: (0, 0)),
        compiler_params=pltpu.CompilerParams(
            dimension_semantics=("arbitrary",)),
    )(*args)
    return logits.reshape(B, T, VOCAB)


# ---------------- deterministic parameter init (matches module shapes) --------
def init_params(key):
    C, V, L = N_EMBD, VOCAB, N_LAYER
    std = 0.02
    proj_std = 0.02 * (2 * L) ** -0.5
    keys = iter(jax.random.split(key, 2 + 4 * L))

    wte = (jax.random.normal(next(keys), (V, C)) * std).astype(jnp.float32)
    wpe = (jax.random.normal(next(keys), (BLOCK_SIZE, C)) * std).astype(jnp.float32)

    raw_layers = []
    for _ in range(L):
        attn_w = (jax.random.normal(next(keys), (3 * C, C)) * std).astype(jnp.float32)
        attn_b = jnp.zeros((3 * C,), jnp.float32)
        aproj_w = (jax.random.normal(next(keys), (C, C)) * proj_std).astype(jnp.float32)
        aproj_b = jnp.zeros((C,), jnp.float32)
        fc_w = (jax.random.normal(next(keys), (4 * C, C)) * std).astype(jnp.float32)
        fc_b = jnp.zeros((4 * C,), jnp.float32)
        mproj_w = (jax.random.normal(next(keys), (C, 4 * C)) * proj_std).astype(jnp.float32)
        mproj_b = jnp.zeros((C,), jnp.float32)
        ln1w, ln1b = jnp.ones((C,), jnp.float32), jnp.zeros((C,), jnp.float32)
        ln2w, ln2b = jnp.ones((C,), jnp.float32), jnp.zeros((C,), jnp.float32)
        raw_layers.append(dict(
            attn_w=attn_w, attn_b=attn_b, aproj_w=aproj_w, aproj_b=aproj_b,
            fc_w=fc_w, fc_b=fc_b, mproj_w=mproj_w, mproj_b=mproj_b,
            ln1w=ln1w, ln1b=ln1b, ln2w=ln2w, ln2b=ln2b))

    lnfw, lnfb = jnp.ones((C,), jnp.float32), jnp.zeros((C,), jnp.float32)

    # ---- kernel packing: per-layer tensors stacked along a leading L axis ----
    def stack(fn):
        return jnp.stack([fn(lp) for lp in raw_layers], axis=0)

    # fold the 1/sqrt(head_dim) attention scale into the Q columns of QKV
    scale = 1.0 / math.sqrt(HEAD_DIM)
    qscale = jnp.concatenate([jnp.full((C,), scale, jnp.float32),
                              jnp.ones((2 * C,), jnp.float32)])

    packed = dict(
        emb=jnp.concatenate([wte, wpe], axis=0).astype(jnp.bfloat16),        # (V+block, C)
        wteT=wte.T.astype(jnp.bfloat16),                                     # (C, V) tied lm_head, pre-T
        ln1=stack(lambda p: jnp.stack([p['ln1w'], p['ln1b']])),              # (L, 2, C) f32
        wqkv=stack(lambda p: (p['attn_w'] * qscale[:, None]).T).astype(jnp.bfloat16),  # (L, C, 3C)
        bqkv=stack(lambda p: (p['attn_b'] * qscale).reshape(1, 3 * C)),      # (L, 1, 3C) f32
        wo=stack(lambda p: p['aproj_w'].T).astype(jnp.bfloat16),             # (L, C, C)
        bo=stack(lambda p: p['aproj_b'].reshape(1, C)),                      # (L, 1, C) f32
        ln2=stack(lambda p: jnp.stack([p['ln2w'], p['ln2b']])),              # (L, 2, C) f32
        wfc=stack(lambda p: p['fc_w'].T).astype(jnp.bfloat16),               # (L, C, 4C)
        bfc=stack(lambda p: p['fc_b'].reshape(1, 4 * C)),                    # (L, 1, 4C) f32
        wpr=stack(lambda p: p['mproj_w'].T).astype(jnp.bfloat16),            # (L, 4C, C)
        bpr=stack(lambda p: p['mproj_b'].reshape(1, C)),                     # (L, 1, C) f32
        lnf=jnp.stack([lnfw, lnfb]),                                         # (2, C) f32
    )
    return dict(packed=packed, wte=wte, wpe=wpe, layers=raw_layers,
                lnfw=lnfw, lnfb=lnfb)


# ---------------- pure-JAX reference (torch semantics, f32) -------------------
def _ln_ref(x, w, b):
    mu = x.mean(-1, keepdims=True)
    var = ((x - mu) ** 2).mean(-1, keepdims=True)
    return (x - mu) / jnp.sqrt(var + EPS) * w + b


def ref_forward(idx, params):
    B, T = idx.shape
    x = params['wte'][idx] + params['wpe'][:T]
    for lp in params['layers']:
        h = _ln_ref(x, lp['ln1w'], lp['ln1b'])
        qkv = h @ lp['attn_w'].T + lp['attn_b']
        q, k, v = jnp.split(qkv, 3, axis=-1)
        q = q.reshape(B, T, N_HEAD, HEAD_DIM).transpose(0, 2, 1, 3)
        k = k.reshape(B, T, N_HEAD, HEAD_DIM).transpose(0, 2, 1, 3)
        v = v.reshape(B, T, N_HEAD, HEAD_DIM).transpose(0, 2, 1, 3)
        s = (q @ jnp.swapaxes(k, -1, -2)) / math.sqrt(HEAD_DIM)
        mask = jnp.tril(jnp.ones((T, T), bool))
        s = jnp.where(mask, s, NEG_INF)
        p = jax.nn.softmax(s, axis=-1)
        y = (p @ v).transpose(0, 2, 1, 3).reshape(B, T, N_EMBD)
        x = x + (y @ lp['aproj_w'].T + lp['aproj_b'])
        h2 = _ln_ref(x, lp['ln2w'], lp['ln2b'])
        f = _gelu_tanh(h2 @ lp['fc_w'].T + lp['fc_b'])
        x = x + (f @ lp['mproj_w'].T + lp['mproj_b'])
    x = _ln_ref(x, params['lnfw'], params['lnfb'])
    return x @ params['wte'].T


# ---------------- main ---------------------------------------------------------
if __name__ == "__main__":
    key = jax.random.PRNGKey(0)
    pkey, ikey = jax.random.split(key)
    params = init_params(pkey)

    B, T = 2, 8
    idx = jax.random.randint(ikey, (B, T), 0, VOCAB, dtype=jnp.int32)

    logits = jax.jit(gpt_forward)(idx, params)
    logits = jax.block_until_ready(logits)

    assert logits.shape == (B, T, VOCAB)
    assert bool(jnp.all(jnp.isfinite(logits)))

    ref = jax.block_until_ready(ref_forward(idx, params))
    np.testing.assert_allclose(np.asarray(logits), np.asarray(ref),
                               rtol=5e-2, atol=1e-2)

    print("KERNEL_OK")
</pallas_src>

<mosaic_0001>
module attributes {stable_mosaic.version = 11 : i64} {
  func.func @kernel(%arg0: i32, %arg1: memref<16x1xi32, #tpu.memory_space<vmem>>, %arg2: memref<144x32xbf16, #tpu.memory_space<vmem>>, %arg3: memref<64x32xf32, #tpu.memory_space<vmem>>, %arg4: memref<64x16xf32, #tpu.memory_space<vmem>>, %arg5: memref<2x2x32xf32, #tpu.memory_space<vmem>>, %arg6: memref<2x32x96xbf16, #tpu.memory_space<vmem>>, %arg7: memref<2x1x96xf32, #tpu.memory_space<vmem>>, %arg8: memref<2x32x32xbf16, #tpu.memory_space<vmem>>, %arg9: memref<2x1x32xf32, #tpu.memory_space<vmem>>, %arg10: memref<2x2x32xf32, #tpu.memory_space<vmem>>, %arg11: memref<2x32x128xbf16, #tpu.memory_space<vmem>>, %arg12: memref<2x1x128xf32, #tpu.memory_space<vmem>>, %arg13: memref<2x128x32xbf16, #tpu.memory_space<vmem>>, %arg14: memref<2x1x32xf32, #tpu.memory_space<vmem>>, %arg15: memref<2x32xf32, #tpu.memory_space<vmem>>, %arg16: memref<32x128xbf16, #tpu.memory_space<vmem>>, %arg17: memref<16x128xf32, #tpu.memory_space<vmem>>) attributes {dimension_semantics = [#tpu.dimension_semantics<arbitrary>], iteration_bounds = array<i64: 1>, scalar_prefetch = 0 : i64, scratch_operands = 0 : i64, tpu.core_type = #tpu.core_type<tc>, window_params = [{pipeline_mode = #tpu.pipeline_mode<synchronous>, transform_indices = @transform_0, window_bounds = array<i64: 16, 1>}, {pipeline_mode = #tpu.pipeline_mode<synchronous>, transform_indices = @transform_1, window_bounds = array<i64: 144, 32>}, {pipeline_mode = #tpu.pipeline_mode<synchronous>, transform_indices = @transform_2, window_bounds = array<i64: 64, 32>}, {pipeline_mode = #tpu.pipeline_mode<synchronous>, transform_indices = @transform_3, window_bounds = array<i64: 64, 16>}, {pipeline_mode = #tpu.pipeline_mode<synchronous>, transform_indices = @transform_4, window_bounds = array<i64: 2, 2, 32>}, {pipeline_mode = #tpu.pipeline_mode<synchronous>, transform_indices = @transform_5, window_bounds = array<i64: 2, 32, 96>}, {pipeline_mode = #tpu.pipeline_mode<synchronous>, transform_indices = @transform_6, window_bounds = array<i64: 2, 1, 96>}, {pipeline_mode = #tpu.pipeline_mode<synchronous>, transform_indices = @transform_7, window_bounds = array<i64: 2, 32, 32>}, {pipeline_mode = #tpu.pipeline_mode<synchronous>, transform_indices = @transform_8, window_bounds = array<i64: 2, 1, 32>}, {pipeline_mode = #tpu.pipeline_mode<synchronous>, transform_indices = @transform_9, window_bounds = array<i64: 2, 2, 32>}, {pipeline_mode = #tpu.pipeline_mode<synchronous>, transform_indices = @transform_10, window_bounds = array<i64: 2, 32, 128>}, {pipeline_mode = #tpu.pipeline_mode<synchronous>, transform_indices = @transform_11, window_bounds = array<i64: 2, 1, 128>}, {pipeline_mode = #tpu.pipeline_mode<synchronous>, transform_indices = @transform_12, window_bounds = array<i64: 2, 128, 32>}, {pipeline_mode = #tpu.pipeline_mode<synchronous>, transform_indices = @transform_13, window_bounds = array<i64: 2, 1, 32>}, {pipeline_mode = #tpu.pipeline_mode<synchronous>, transform_indices = @transform_14, window_bounds = array<i64: 2, 32>}, {pipeline_mode = #tpu.pipeline_mode<synchronous>, transform_indices = @transform_15, window_bounds = array<i64: 32, 128>}, {pipeline_mode = #tpu.pipeline_mode<synchronous>, transform_indices = @transform_16, window_bounds = array<i64: 16, 128>}]} {
    %c0 = arith.constant 0 : index
    %c0_0 = arith.constant 0 : index
    %0 = vector.load %arg1[%c0, %c0_0] : memref<16x1xi32, #tpu.memory_space<vmem>>, vector<16x1xi32>
    %1 = tpu.iota {dimensions = array<i32: 1>} : vector<16x128xi32>
    %2 = vector.broadcast %0 : vector<16x1xi32> to vector<16x128xi32>
    %3 = arith.cmpi eq, %1, %2 : vector<16x128xi32>
    %4 = arith.extui %3 : vector<16x128xi1> to vector<16x128xi32>
    %5 = arith.sitofp %4 : vector<16x128xi32> to vector<16x128xf32>
    %6 = tpu.iota {dimensions = array<i32: 0>} : vector<16x16xi32>
    %c8_i32 = arith.constant 8 : i32
    %c0_i32 = arith.constant 0 : i32
    %7 = arith.cmpi eq, %c8_i32, %c0_i32 : i32
    %c1_i32 = arith.constant 1 : i32
    %8 = arith.select %7, %c1_i32, %c8_i32 : i32
    %9 = vector.broadcast %8 : i32 to vector<16x16xi32>
    %10 = arith.remsi %6, %9 : vector<16x16xi32>
    %c0_i32_1 = arith.constant 0 : i32
    %11 = vector.broadcast %c0_i32_1 : i32 to vector<16x16xi32>
    %12 = arith.cmpi ne, %10, %11 : vector<16x16xi32>
    %c0_i32_2 = arith.constant 0 : i32
    %13 = vector.broadcast %c0_i32_2 : i32 to vector<16x16xi32>
    %14 = arith.cmpi slt, %10, %13 : vector<16x16xi32>
    %c0_i32_3 = arith.constant 0 : i32
    %15 = arith.cmpi slt, %8, %c0_i32_3 : i32
    %16 = vector.broadcast %15 : i1 to vector<16x16xi1>
    %17 = vector.broadcast %16 : vector<16x16xi1> to vector<16x16xi1>
    %18 = arith.xori %14, %17 : vector<16x16xi1>
    %19 = arith.andi %18, %12 : vector<16x16xi1>
    %20 = vector.broadcast %8 : i32 to vector<16x16xi32>
    %21 = arith.addi %10, %20 : vector<16x16xi32>
    %22 = arith.select %19, %21, %10 : vector<16x16xi1>, vector<16x16xi32>
    %23 = tpu.iota {dimensions = array<i32: 1>} : vector<16x16xi32>
    %24 = arith.cmpi eq, %23, %22 : vector<16x16xi32>
    %25 = arith.extui %24 : vector<16x16xi1> to vector<16x16xi32>
    %26 = arith.sitofp %25 : vector<16x16xi32> to vector<16x16xf32>
    %27 = tpu.concatenate %5, %26 in 1 : vector<16x128xf32>, vector<16x16xf32> -> vector<16x144xf32>
    %c0_4 = arith.constant 0 : index
    %c0_5 = arith.constant 0 : index
    %28 = vector.load %arg2[%c0_4, %c0_5] : memref<144x32xbf16, #tpu.memory_space<vmem>>, vector<144x32xbf16>
    %29 = arith.truncf %27 : vector<16x144xf32> to vector<16x144xbf16>
    %cst = arith.constant dense<0.000000e+00> : vector<16x32xf32>
    %30 = tpu.matmul %29, %28, %cst {dimension_numbers = #tpu.dot_dimension_numbers<[1], [0], [0], [1], [0, 0, 1, 1], [], []>} : vector<16x144xbf16>, vector<144x32xbf16>, vector<16x32xf32> -> vector<16x32xf32>
    %c0_6 = arith.constant 0 : index
    %c0_7 = arith.constant 0 : index
    %31 = vector.load %arg3[%c0_6, %c0_7] : memref<64x32xf32, #tpu.memory_space<vmem>>, vector<64x32xf32>
    %c0_8 = arith.constant 0 : index
    %c0_9 = arith.constant 0 : index
    %32 = vector.load %arg4[%c0_8, %c0_9] : memref<64x16xf32, #tpu.memory_space<vmem>>, vector<64x16xf32>
    %c0_10 = arith.constant 0 : index
    %c0_11 = arith.constant 0 : index
    %c0_12 = arith.constant 0 : index
    %33 = vector.load %arg5[%c0_10, %c0_11, %c0_12] : memref<2x2x32xf32, #tpu.memory_space<vmem>>, vector<1x2x32xf32>
    %34 = vector.shape_cast %33 : vector<1x2x32xf32> to vector<2x32xf32>
    %35 = vector.extract_strided_slice %34 {offsets = [0, 0], sizes = [1, 32], strides = [1, 1]} : vector<2x32xf32> to vector<1x32xf32>
    %36 = vector.extract_strided_slice %34 {offsets = [1, 0], sizes = [1, 32], strides = [1, 1]} : vector<2x32xf32> to vector<1x32xf32>
    %cst_13 = arith.constant dense<0.000000e+00> : vector<16xf32>
    %37 = vector.multi_reduction <add>, %30, %cst_13 [1] : vector<16x32xf32> to vector<16xf32>
    %38 = vector.shape_cast %37 : vector<16xf32> to vector<16x1xf32>
    %cst_14 = arith.constant 3.200000e+01 : f32
    %39 = vector.broadcast %cst_14 : f32 to vector<16x1xf32>
    %40 = arith.divf %38, %39 : vector<16x1xf32>
    %41 = vector.broadcast %40 : vector<16x1xf32> to vector<16x32xf32>
    %42 = arith.subf %30, %41 : vector<16x32xf32>
    %43 = arith.mulf %42, %42 : vector<16x32xf32>
    %cst_15 = arith.constant dense<0.000000e+00> : vector<16xf32>
    %44 = vector.multi_reduction <add>, %43, %cst_15 [1] : vector<16x32xf32> to vector<16xf32>
    %45 = vector.shape_cast %44 : vector<16xf32> to vector<16x1xf32>
    %cst_16 = arith.constant 3.200000e+01 : f32
    %46 = vector.broadcast %cst_16 : f32 to vector<16x1xf32>
    %47 = arith.divf %45, %46 : vector<16x1xf32>
    %48 = vector.broadcast %40 : vector<16x1xf32> to vector<16x32xf32>
    %49 = arith.subf %30, %48 : vector<16x32xf32>
    %cst_17 = arith.constant 9.99999974E-6 : f32
    %50 = vector.broadcast %cst_17 : f32 to vector<16x1xf32>
    %51 = arith.addf %47, %50 : vector<16x1xf32>
    %52 = math.rsqrt %51 : vector<16x1xf32>
    %53 = vector.broadcast %52 : vector<16x1xf32> to vector<16x32xf32>
    %54 = arith.mulf %49, %53 : vector<16x32xf32>
    %55 = vector.broadcast %35 : vector<1x32xf32> to vector<16x32xf32>
    %56 = arith.mulf %54, %55 : vector<16x32xf32>
    %57 = vector.broadcast %36 : vector<1x32xf32> to vector<16x32xf32>
    %58 = arith.addf %56, %57 : vector<16x32xf32>
    %c0_18 = arith.constant 0 : index
    %c0_19 = arith.constant 0 : index
    %c0_20 = arith.constant 0 : index
    %59 = vector.load %arg6[%c0_18, %c0_19, %c0_20] : memref<2x32x96xbf16, #tpu.memory_space<vmem>>, vector<1x32x96xbf16>
    %60 = vector.shape_cast %59 : vector<1x32x96xbf16> to vector<32x96xbf16>
    %61 = arith.truncf %58 : vector<16x32xf32> to vector<16x32xbf16>
    %cst_21 = arith.constant dense<0.000000e+00> : vector<16x96xf32>
    %62 = tpu.matmul %61, %60, %cst_21 {dimension_numbers = #tpu.dot_dimension_numbers<[1], [0], [0], [1], [0, 0, 1, 1], [], []>} : vector<16x32xbf16>, vector<32x96xbf16>, vector<16x96xf32> -> vector<16x96xf32>
    %c0_22 = arith.constant 0 : index
    %c0_23 = arith.constant 0 : index
    %c0_24 = arith.constant 0 : index
    %63 = vector.load %arg7[%c0_22, %c0_23, %c0_24] : memref<2x1x96xf32, #tpu.memory_space<vmem>>, vector<1x1x96xf32>
    %64 = vector.shape_cast %63 : vector<1x1x96xf32> to vector<1x96xf32>
    %65 = vector.broadcast %64 : vector<1x96xf32> to vector<16x96xf32>
    %66 = arith.addf %62, %65 : vector<16x96xf32>
    %67 = vector.extract_strided_slice %66 {offsets = [0, 0], sizes = [16, 32], strides = [1, 1]} : vector<16x96xf32> to vector<16x32xf32>
    %68 = vector.extract_strided_slice %66 {offsets = [0, 32], sizes = [16, 32], strides = [1, 1]} : vector<16x96xf32> to vector<16x32xf32>
    %69 = vector.extract_strided_slice %66 {offsets = [0, 64], sizes = [16, 32], strides = [1, 1]} : vector<16x96xf32> to vector<16x32xf32>
    %70 = tpu.transpose %68, [1, 0] : vector<16x32xf32> -> vector<32x16xf32>
    %71 = tpu.concatenate %67, %67, %67, %67 in 0 : vector<16x32xf32>, vector<16x32xf32>, vector<16x32xf32>, vector<16x32xf32> -> vector<64x32xf32>
    %72 = arith.mulf %71, %31 : vector<64x32xf32>
    %73 = arith.truncf %72 : vector<64x32xf32> to vector<64x32xbf16>
    %74 = arith.truncf %70 : vector<32x16xf32> to vector<32x16xbf16>
    %cst_25 = arith.constant dense<0.000000e+00> : vector<64x16xf32>
    %75 = tpu.matmul %73, %74, %cst_25 {dimension_numbers = #tpu.dot_dimension_numbers<[1], [0], [0], [1], [0, 0, 1, 1], [], []>} : vector<64x32xbf16>, vector<32x16xbf16>, vector<64x16xf32> -> vector<64x16xf32>
    %76 = arith.addf %75, %32 : vector<64x16xf32>
    %cst_26 = arith.constant dense<0xFF800000> : vector<64xf32>
    %77 = vector.multi_reduction <maximumf>, %76, %cst_26 [1] : vector<64x16xf32> to vector<64xf32>
    %78 = vector.shape_cast %77 : vector<64xf32> to vector<64x1xf32>
    %79 = vector.broadcast %78 : vector<64x1xf32> to vector<64x16xf32>
    %80 = arith.subf %76, %79 : vector<64x16xf32>
    %81 = math.exp %80 : vector<64x16xf32>
    %cst_27 = arith.constant dense<0.000000e+00> : vector<64xf32>
    %82 = vector.multi_reduction <add>, %81, %cst_27 [1] : vector<64x16xf32> to vector<64xf32>
    %83 = vector.shape_cast %82 : vector<64xf32> to vector<64x1xf32>
    %84 = tpu.reciprocal %83 {approx = true} : vector<64x1xf32> -> vector<64x1xf32>
    %85 = vector.broadcast %84 : vector<64x1xf32> to vector<64x16xf32>
    %86 = arith.mulf %81, %85 : vector<64x16xf32>
    %87 = arith.truncf %86 : vector<64x16xf32> to vector<64x16xbf16>
    %88 = arith.truncf %69 : vector<16x32xf32> to vector<16x32xbf16>
    %cst_28 = arith.constant dense<0.000000e+00> : vector<64x32xf32>
    %89 = tpu.matmul %87, %88, %cst_28 {dimension_numbers = #tpu.dot_dimension_numbers<[1], [0], [0], [1], [0, 0, 1, 1], [], []>} : vector<64x16xbf16>, vector<16x32xbf16>, vector<64x32xf32> -> vector<64x32xf32>
    %90 = arith.mulf %89, %31 : vector<64x32xf32>
    %91 = vector.extract_strided_slice %90 {offsets = [0, 0], sizes = [16, 32], strides = [1, 1]} : vector<64x32xf32> to vector<16x32xf32>
    %92 = vector.extract_strided_slice %90 {offsets = [16, 0], sizes = [16, 32], strides = [1, 1]} : vector<64x32xf32> to vector<16x32xf32>
    %93 = arith.addf %91, %92 : vector<16x32xf32>
    %94 = vector.extract_strided_slice %90 {offsets = [32, 0], sizes = [16, 32], strides = [1, 1]} : vector<64x32xf32> to vector<16x32xf32>
    %95 = arith.addf %93, %94 : vector<16x32xf32>
    %96 = vector.extract_strided_slice %90 {offsets = [48, 0], sizes = [16, 32], strides = [1, 1]} : vector<64x32xf32> to vector<16x32xf32>
    %97 = arith.addf %95, %96 : vector<16x32xf32>
    %c0_29 = arith.constant 0 : index
    %c0_30 = arith.constant 0 : index
    %c0_31 = arith.constant 0 : index
    %98 = vector.load %arg8[%c0_29, %c0_30, %c0_31] : memref<2x32x32xbf16, #tpu.memory_space<vmem>>, vector<1x32x32xbf16>
    %99 = vector.shape_cast %98 : vector<1x32x32xbf16> to vector<32x32xbf16>
    %100 = arith.truncf %97 : vector<16x32xf32> to vector<16x32xbf16>
    %cst_32 = arith.constant dense<0.000000e+00> : vector<16x32xf32>
    %101 = tpu.matmul %100, %99, %cst_32 {dimension_numbers = #tpu.dot_dimension_numbers<[1], [0], [0], [1], [0, 0, 1, 1], [], []>} : vector<16x32xbf16>, vector<32x32xbf16>, vector<16x32xf32> -> vector<16x32xf32>
    %102 = arith.addf %30, %101 : vector<16x32xf32>
    %c0_33 = arith.constant 0 : index
    %c0_34 = arith.constant 0 : index
    %c0_35 = arith.constant 0 : index
    %103 = vector.load %arg9[%c0_33, %c0_34, %c0_35] : memref<2x1x32xf32, #tpu.memory_space<vmem>>, vector<1x1x32xf32>
    %104 = vector.shape_cast %103 : vector<1x1x32xf32> to vector<1x32xf32>
    %105 = vector.broadcast %104 : vector<1x32xf32> to vector<16x32xf32>
    %106 = arith.addf %102, %105 : vector<16x32xf32>
    %c0_36 = arith.constant 0 : index
    %c0_37 = arith.constant 0 : index
    %c0_38 = arith.constant 0 : index
    %107 = vector.load %arg10[%c0_36, %c0_37, %c0_38] : memref<2x2x32xf32, #tpu.memory_space<vmem>>, vector<1x2x32xf32>
    %108 = vector.shape_cast %107 : vector<1x2x32xf32> to vector<2x32xf32>
    %109 = vector.extract_strided_slice %108 {offsets = [0, 0], sizes = [1, 32], strides = [1, 1]} : vector<2x32xf32> to vector<1x32xf32>
    %110 = vector.extract_strided_slice %108 {offsets = [1, 0], sizes = [1, 32], strides = [1, 1]} : vector<2x32xf32> to vector<1x32xf32>
    %cst_39 = arith.constant dense<0.000000e+00> : vector<16xf32>
    %111 = vector.multi_reduction <add>, %106, %cst_39 [1] : vector<16x32xf32> to vector<16xf32>
    %112 = vector.shape_cast %111 : vector<16xf32> to vector<16x1xf32>
    %cst_40 = arith.constant 3.200000e+01 : f32
    %113 = vector.broadcast %cst_40 : f32 to vector<16x1xf32>
    %114 = arith.divf %112, %113 : vector<16x1xf32>
    %115 = vector.broadcast %114 : vector<16x1xf32> to vector<16x32xf32>
    %116 = arith.subf %106, %115 : vector<16x32xf32>
    %117 = arith.mulf %116, %116 : vector<16x32xf32>
    %cst_41 = arith.constant dense<0.000000e+00> : vector<16xf32>
    %118 = vector.multi_reduction <add>, %117, %cst_41 [1] : vector<16x32xf32> to vector<16xf32>
    %119 = vector.shape_cast %118 : vector<16xf32> to vector<16x1xf32>
    %cst_42 = arith.constant 3.200000e+01 : f32
    %120 = vector.broadcast %cst_42 : f32 to vector<16x1xf32>
    %121 = arith.divf %119, %120 : vector<16x1xf32>
    %122 = vector.broadcast %114 : vector<16x1xf32> to vector<16x32xf32>
    %123 = arith.subf %106, %122 : vector<16x32xf32>
    %cst_43 = arith.constant 9.99999974E-6 : f32
    %124 = vector.broadcast %cst_43 : f32 to vector<16x1xf32>
    %125 = arith.addf %121, %124 : vector<16x1xf32>
    %126 = math.rsqrt %125 : vector<16x1xf32>
    %127 = vector.broadcast %126 : vector<16x1xf32> to vector<16x32xf32>
    %128 = arith.mulf %123, %127 : vector<16x32xf32>
    %129 = vector.broadcast %109 : vector<1x32xf32> to vector<16x32xf32>
    %130 = arith.mulf %128, %129 : vector<16x32xf32>
    %131 = vector.broadcast %110 : vector<1x32xf32> to vector<16x32xf32>
    %132 = arith.addf %130, %131 : vector<16x32xf32>
    %c0_44 = arith.constant 0 : index
    %c0_45 = arith.constant 0 : index
    %c0_46 = arith.constant 0 : index
    %133 = vector.load %arg11[%c0_44, %c0_45, %c0_46] : memref<2x32x128xbf16, #tpu.memory_space<vmem>>, vector<1x32x128xbf16>
    %134 = vector.shape_cast %133 : vector<1x32x128xbf16> to vector<32x128xbf16>
    %135 = arith.truncf %132 : vector<16x32xf32> to vector<16x32xbf16>
    %cst_47 = arith.constant dense<0.000000e+00> : vector<16x128xf32>
    %136 = tpu.matmul %135, %134, %cst_47 {dimension_numbers = #tpu.dot_dimension_numbers<[1], [0], [0], [1], [0, 0, 1, 1], [], []>} : vector<16x32xbf16>, vector<32x128xbf16>, vector<16x128xf32> -> vector<16x128xf32>
    %c0_48 = arith.constant 0 : index
    %c0_49 = arith.constant 0 : index
    %c0_50 = arith.constant 0 : index
    %137 = vector.load %arg12[%c0_48, %c0_49, %c0_50] : memref<2x1x128xf32, #tpu.memory_space<vmem>>, vector<1x1x128xf32>
    %138 = vector.shape_cast %137 : vector<1x1x128xf32> to vector<1x128xf32>
    %139 = vector.broadcast %138 : vector<1x128xf32> to vector<16x128xf32>
    %140 = arith.addf %136, %139 : vector<16x128xf32>
    %cst_51 = arith.constant 5.000000e-01 : f32
    %141 = vector.broadcast %cst_51 : f32 to vector<16x128xf32>
    %142 = arith.mulf %141, %140 : vector<16x128xf32>
    %cst_52 = arith.constant 4.471500e-02 : f32
    %143 = vector.broadcast %cst_52 : f32 to vector<16x128xf32>
    %144 = arith.mulf %143, %140 : vector<16x128xf32>
    %145 = arith.mulf %144, %140 : vector<16x128xf32>
    %146 = arith.mulf %145, %140 : vector<16x128xf32>
    %147 = arith.addf %140, %146 : vector<16x128xf32>
    %cst_53 = arith.constant 0.797884583 : f32
    %148 = vector.broadcast %cst_53 : f32 to vector<16x128xf32>
    %149 = arith.mulf %148, %147 : vector<16x128xf32>
    %150 = math.tanh %149 : vector<16x128xf32>
    %cst_54 = arith.constant 1.000000e+00 : f32
    %151 = vector.broadcast %cst_54 : f32 to vector<16x128xf32>
    %152 = arith.addf %151, %150 : vector<16x128xf32>
    %153 = arith.mulf %142, %152 : vector<16x128xf32>
    %c0_55 = arith.constant 0 : index
    %c0_56 = arith.constant 0 : index
    %c0_57 = arith.constant 0 : index
    %154 = vector.load %arg13[%c0_55, %c0_56, %c0_57] : memref<2x128x32xbf16, #tpu.memory_space<vmem>>, vector<1x128x32xbf16>
    %155 = vector.shape_cast %154 : vector<1x128x32xbf16> to vector<128x32xbf16>
    %156 = arith.truncf %153 : vector<16x128xf32> to vector<16x128xbf16>
    %cst_58 = arith.constant dense<0.000000e+00> : vector<16x32xf32>
    %157 = tpu.matmul %156, %155, %cst_58 {dimension_numbers = #tpu.dot_dimension_numbers<[1], [0], [0], [1], [0, 0, 1, 1], [], []>} : vector<16x128xbf16>, vector<128x32xbf16>, vector<16x32xf32> -> vector<16x32xf32>
    %158 = arith.addf %106, %157 : vector<16x32xf32>
    %c0_59 = arith.constant 0 : index
    %c0_60 = arith.constant 0 : index
    %c0_61 = arith.constant 0 : index
    %159 = vector.load %arg14[%c0_59, %c0_60, %c0_61] : memref<2x1x32xf32, #tpu.memory_space<vmem>>, vector<1x1x32xf32>
    %160 = vector.shape_cast %159 : vector<1x1x32xf32> to vector<1x32xf32>
    %161 = vector.broadcast %160 : vector<1x32xf32> to vector<16x32xf32>
    %162 = arith.addf %158, %161 : vector<16x32xf32>
    %c1 = arith.constant 1 : index
    %c0_62 = arith.constant 0 : index
    %c0_63 = arith.constant 0 : index
    %163 = vector.load %arg5[%c1, %c0_62, %c0_63] : memref<2x2x32xf32, #tpu.memory_space<vmem>>, vector<1x2x32xf32>
    %164 = vector.shape_cast %163 : vector<1x2x32xf32> to vector<2x32xf32>
    %165 = vector.extract_strided_slice %164 {offsets = [0, 0], sizes = [1, 32], strides = [1, 1]} : vector<2x32xf32> to vector<1x32xf32>
    %166 = vector.extract_strided_slice %164 {offsets = [1, 0], sizes = [1, 32], strides = [1, 1]} : vector<2x32xf32> to vector<1x32xf32>
    %cst_64 = arith.constant dense<0.000000e+00> : vector<16xf32>
    %167 = vector.multi_reduction <add>, %162, %cst_64 [1] : vector<16x32xf32> to vector<16xf32>
    %168 = vector.shape_cast %167 : vector<16xf32> to vector<16x1xf32>
    %cst_65 = arith.constant 3.200000e+01 : f32
    %169 = vector.broadcast %cst_65 : f32 to vector<16x1xf32>
    %170 = arith.divf %168, %169 : vector<16x1xf32>
    %171 = vector.broadcast %170 : vector<16x1xf32> to vector<16x32xf32>
    %172 = arith.subf %162, %171 : vector<16x32xf32>
    %173 = arith.mulf %172, %172 : vector<16x32xf32>
    %cst_66 = arith.constant dense<0.000000e+00> : vector<16xf32>
    %174 = vector.multi_reduction <add>, %173, %cst_66 [1] : vector<16x32xf32> to vector<16xf32>
    %175 = vector.shape_cast %174 : vector<16xf32> to vector<16x1xf32>
    %cst_67 = arith.constant 3.200000e+01 : f32
    %176 = vector.broadcast %cst_67 : f32 to vector<16x1xf32>
    %177 = arith.divf %175, %176 : vector<16x1xf32>
    %178 = vector.broadcast %170 : vector<16x1xf32> to vector<16x32xf32>
    %179 = arith.subf %162, %178 : vector<16x32xf32>
    %cst_68 = arith.constant 9.99999974E-6 : f32
    %180 = vector.broadcast %cst_68 : f32 to vector<16x1xf32>
    %181 = arith.addf %177, %180 : vector<16x1xf32>
    %182 = math.rsqrt %181 : vector<16x1xf32>
    %183 = vector.broadcast %182 : vector<16x1xf32> to vector<16x32xf32>
    %184 = arith.mulf %179, %183 : vector<16x32xf32>
    %185 = vector.broadcast %165 : vector<1x32xf32> to vector<16x32xf32>
    %186 = arith.mulf %184, %185 : vector<16x32xf32>
    %187 = vector.broadcast %166 : vector<1x32xf32> to vector<16x32xf32>
    %188 = arith.addf %186, %187 : vector<16x32xf32>
    %c1_69 = arith.constant 1 : index
    %c0_70 = arith.constant 0 : index
    %c0_71 = arith.constant 0 : index
    %189 = vector.load %arg6[%c1_69, %c0_70, %c0_71] : memref<2x32x96xbf16, #tpu.memory_space<vmem>>, vector<1x32x96xbf16>
    %190 = vector.shape_cast %189 : vector<1x32x96xbf16> to vector<32x96xbf16>
    %191 = arith.truncf %188 : vector<16x32xf32> to vector<16x32xbf16>
    %cst_72 = arith.constant dense<0.000000e+00> : vector<16x96xf32>
    %192 = tpu.matmul %191, %190, %cst_72 {dimension_numbers = #tpu.dot_dimension_numbers<[1], [0], [0], [1], [0, 0, 1, 1], [], []>} : vector<16x32xbf16>, vector<32x96xbf16>, vector<16x96xf32> -> vector<16x96xf32>
    %c1_73 = arith.constant 1 : index
    %c0_74 = arith.constant 0 : index
    %c0_75 = arith.constant 0 : index
    %193 = vector.load %arg7[%c1_73, %c0_74, %c0_75] : memref<2x1x96xf32, #tpu.memory_space<vmem>>, vector<1x1x96xf32>
    %194 = vector.shape_cast %193 : vector<1x1x96xf32> to vector<1x96xf32>
    %195 = vector.broadcast %194 : vector<1x96xf32> to vector<16x96xf32>
    %196 = arith.addf %192, %195 : vector<16x96xf32>
    %197 = vector.extract_strided_slice %196 {offsets = [0, 0], sizes = [16, 32], strides = [1, 1]} : vector<16x96xf32> to vector<16x32xf32>
    %198 = vector.extract_strided_slice %196 {offsets = [0, 32], sizes = [16, 32], strides = [1, 1]} : vector<16x96xf32> to vector<16x32xf32>
    %199 = vector.extract_strided_slice %196 {offsets = [0, 64], sizes = [16, 32], strides = [1, 1]} : vector<16x96xf32> to vector<16x32xf32>
    %200 = tpu.transpose %198, [1, 0] : vector<16x32xf32> -> vector<32x16xf32>
    %201 = tpu.concatenate %197, %197, %197, %197 in 0 : vector<16x32xf32>, vector<16x32xf32>, vector<16x32xf32>, vector<16x32xf32> -> vector<64x32xf32>
    %202 = arith.mulf %201, %31 : vector<64x32xf32>
    %203 = arith.truncf %202 : vector<64x32xf32> to vector<64x32xbf16>
    %204 = arith.truncf %200 : vector<32x16xf32> to vector<32x16xbf16>
    %cst_76 = arith.constant dense<0.000000e+00> : vector<64x16xf32>
    %205 = tpu.matmul %203, %204, %cst_76 {dimension_numbers = #tpu.dot_dimension_numbers<[1], [0], [0], [1], [0, 0, 1, 1], [], []>} : vector<64x32xbf16>, vector<32x16xbf16>, vector<64x16xf32> -> vector<64x16xf32>
    %206 = arith.addf %205, %32 : vector<64x16xf32>
    %cst_77 = arith.constant dense<0xFF800000> : vector<64xf32>
    %207 = vector.multi_reduction <maximumf>, %206, %cst_77 [1] : vector<64x16xf32> to vector<64xf32>
    %208 = vector.shape_cast %207 : vector<64xf32> to vector<64x1xf32>
    %209 = vector.broadcast %208 : vector<64x1xf32> to vector<64x16xf32>
    %210 = arith.subf %206, %209 : vector<64x16xf32>
    %211 = math.exp %210 : vector<64x16xf32>
    %cst_78 = arith.constant dense<0.000000e+00> : vector<64xf32>
    %212 = vector.multi_reduction <add>, %211, %cst_78 [1] : vector<64x16xf32> to vector<64xf32>
    %213 = vector.shape_cast %212 : vector<64xf32> to vector<64x1xf32>
    %214 = tpu.reciprocal %213 {approx = true} : vector<64x1xf32> -> vector<64x1xf32>
    %215 = vector.broadcast %214 : vector<64x1xf32> to vector<64x16xf32>
    %216 = arith.mulf %211, %215 : vector<64x16xf32>
    %217 = arith.truncf %216 : vector<64x16xf32> to vector<64x16xbf16>
    %218 = arith.truncf %199 : vector<16x32xf32> to vector<16x32xbf16>
    %cst_79 = arith.constant dense<0.000000e+00> : vector<64x32xf32>
    %219 = tpu.matmul %217, %218, %cst_79 {dimension_numbers = #tpu.dot_dimension_numbers<[1], [0], [0], [1], [0, 0, 1, 1], [], []>} : vector<64x16xbf16>, vector<16x32xbf16>, vector<64x32xf32> -> vector<64x32xf32>
    %220 = arith.mulf %219, %31 : vector<64x32xf32>
    %221 = vector.extract_strided_slice %220 {offsets = [0, 0], sizes = [16, 32], strides = [1, 1]} : vector<64x32xf32> to vector<16x32xf32>
    %222 = vector.extract_strided_slice %220 {offsets = [16, 0], sizes = [16, 32], strides = [1, 1]} : vector<64x32xf32> to vector<16x32xf32>
    %223 = arith.addf %221, %222 : vector<16x32xf32>
    %224 = vector.extract_strided_slice %220 {offsets = [32, 0], sizes = [16, 32], strides = [1, 1]} : vector<64x32xf32> to vector<16x32xf32>
    %225 = arith.addf %223, %224 : vector<16x32xf32>
    %226 = vector.extract_strided_slice %220 {offsets = [48, 0], sizes = [16, 32], strides = [1, 1]} : vector<64x32xf32> to vector<16x32xf32>
    %227 = arith.addf %225, %226 : vector<16x32xf32>
    %c1_80 = arith.constant 1 : index
    %c0_81 = arith.constant 0 : index
    %c0_82 = arith.constant 0 : index
    %228 = vector.load %arg8[%c1_80, %c0_81, %c0_82] : memref<2x32x32xbf16, #tpu.memory_space<vmem>>, vector<1x32x32xbf16>
    %229 = vector.shape_cast %228 : vector<1x32x32xbf16> to vector<32x32xbf16>
    %230 = arith.truncf %227 : vector<16x32xf32> to vector<16x32xbf16>
    %cst_83 = arith.constant dense<0.000000e+00> : vector<16x32xf32>
    %231 = tpu.matmul %230, %229, %cst_83 {dimension_numbers = #tpu.dot_dimension_numbers<[1], [0], [0], [1], [0, 0, 1, 1], [], []>} : vector<16x32xbf16>, vector<32x32xbf16>, vector<16x32xf32> -> vector<16x32xf32>
    %232 = arith.addf %162, %231 : vector<16x32xf32>
    %c1_84 = arith.constant 1 : index
    %c0_85 = arith.constant 0 : index
    %c0_86 = arith.constant 0 : index
    %233 = vector.load %arg9[%c1_84, %c0_85, %c0_86] : memref<2x1x32xf32, #tpu.memory_space<vmem>>, vector<1x1x32xf32>
    %234 = vector.shape_cast %233 : vector<1x1x32xf32> to vector<1x32xf32>
    %235 = vector.broadcast %234 : vector<1x32xf32> to vector<16x32xf32>
    %236 = arith.addf %232, %235 : vector<16x32xf32>
    %c1_87 = arith.constant 1 : index
    %c0_88 = arith.constant 0 : index
    %c0_89 = arith.constant 0 : index
    %237 = vector.load %arg10[%c1_87, %c0_88, %c0_89] : memref<2x2x32xf32, #tpu.memory_space<vmem>>, vector<1x2x32xf32>
    %238 = vector.shape_cast %237 : vector<1x2x32xf32> to vector<2x32xf32>
    %239 = vector.extract_strided_slice %238 {offsets = [0, 0], sizes = [1, 32], strides = [1, 1]} : vector<2x32xf32> to vector<1x32xf32>
    %240 = vector.extract_strided_slice %238 {offsets = [1, 0], sizes = [1, 32], strides = [1, 1]} : vector<2x32xf32> to vector<1x32xf32>
    %cst_90 = arith.constant dense<0.000000e+00> : vector<16xf32>
    %241 = vector.multi_reduction <add>, %236, %cst_90 [1] : vector<16x32xf32> to vector<16xf32>
    %242 = vector.shape_cast %241 : vector<16xf32> to vector<16x1xf32>
    %cst_91 = arith.constant 3.200000e+01 : f32
    %243 = vector.broadcast %cst_91 : f32 to vector<16x1xf32>
    %244 = arith.divf %242, %243 : vector<16x1xf32>
    %245 = vector.broadcast %244 : vector<16x1xf32> to vector<16x32xf32>
    %246 = arith.subf %236, %245 : vector<16x32xf32>
    %247 = arith.mulf %246, %246 : vector<16x32xf32>
    %cst_92 = arith.constant dense<0.000000e+00> : vector<16xf32>
    %248 = vector.multi_reduction <add>, %247, %cst_92 [1] : vector<16x32xf32> to vector<16xf32>
    %249 = vector.shape_cast %248 : vector<16xf32> to vector<16x1xf32>
    %cst_93 = arith.constant 3.200000e+01 : f32
    %250 = vector.broadcast %cst_93 : f32 to vector<16x1xf32>
    %251 = arith.divf %249, %250 : vector<16x1xf32>
    %252 = vector.broadcast %244 : vector<16x1xf32> to vector<16x32xf32>
    %253 = arith.subf %236, %252 : vector<16x32xf32>
    %cst_94 = arith.constant 9.99999974E-6 : f32
    %254 = vector.broadcast %cst_94 : f32 to vector<16x1xf32>
    %255 = arith.addf %251, %254 : vector<16x1xf32>
    %256 = math.rsqrt %255 : vector<16x1xf32>
    %257 = vector.broadcast %256 : vector<16x1xf32> to vector<16x32xf32>
    %258 = arith.mulf %253, %257 : vector<16x32xf32>
    %259 = vector.broadcast %239 : vector<1x32xf32> to vector<16x32xf32>
    %260 = arith.mulf %258, %259 : vector<16x32xf32>
    %261 = vector.broadcast %240 : vector<1x32xf32> to vector<16x32xf32>
    %262 = arith.addf %260, %261 : vector<16x32xf32>
    %c1_95 = arith.constant 1 : index
    %c0_96 = arith.constant 0 : index
    %c0_97 = arith.constant 0 : index
    %263 = vector.load %arg11[%c1_95, %c0_96, %c0_97] : memref<2x32x128xbf16, #tpu.memory_space<vmem>>, vector<1x32x128xbf16>
    %264 = vector.shape_cast %263 : vector<1x32x128xbf16> to vector<32x128xbf16>
    %265 = arith.truncf %262 : vector<16x32xf32> to vector<16x32xbf16>
    %cst_98 = arith.constant dense<0.000000e+00> : vector<16x128xf32>
    %266 = tpu.matmul %265, %264, %cst_98 {dimension_numbers = #tpu.dot_dimension_numbers<[1], [0], [0], [1], [0, 0, 1, 1], [], []>} : vector<16x32xbf16>, vector<32x128xbf16>, vector<16x128xf32> -> vector<16x128xf32>
    %c1_99 = arith.constant 1 : index
    %c0_100 = arith.constant 0 : index
    %c0_101 = arith.constant 0 : index
    %267 = vector.load %arg12[%c1_99, %c0_100, %c0_101] : memref<2x1x128xf32, #tpu.memory_space<vmem>>, vector<1x1x128xf32>
    %268 = vector.shape_cast %267 : vector<1x1x128xf32> to vector<1x128xf32>
    %269 = vector.broadcast %268 : vector<1x128xf32> to vector<16x128xf32>
    %270 = arith.addf %266, %269 : vector<16x128xf32>
    %cst_102 = arith.constant 5.000000e-01 : f32
    %271 = vector.broadcast %cst_102 : f32 to vector<16x128xf32>
    %272 = arith.mulf %271, %270 : vector<16x128xf32>
    %cst_103 = arith.constant 4.471500e-02 : f32
    %273 = vector.broadcast %cst_103 : f32 to vector<16x128xf32>
    %274 = arith.mulf %273, %270 : vector<16x128xf32>
    %275 = arith.mulf %274, %270 : vector<16x128xf32>
    %276 = arith.mulf %275, %270 : vector<16x128xf32>
    %277 = arith.addf %270, %276 : vector<16x128xf32>
    %cst_104 = arith.constant 0.797884583 : f32
    %278 = vector.broadcast %cst_104 : f32 to vector<16x128xf32>
    %279 = arith.mulf %278, %277 : vector<16x128xf32>
    %280 = math.tanh %279 : vector<16x128xf32>
    %cst_105 = arith.constant 1.000000e+00 : f32
    %281 = vector.broadcast %cst_105 : f32 to vector<16x128xf32>
    %282 = arith.addf %281, %280 : vector<16x128xf32>
    %283 = arith.mulf %272, %282 : vector<16x128xf32>
    %c1_106 = arith.constant 1 : index
    %c0_107 = arith.constant 0 : index
    %c0_108 = arith.constant 0 : index
    %284 = vector.load %arg13[%c1_106, %c0_107, %c0_108] : memref<2x128x32xbf16, #tpu.memory_space<vmem>>, vector<1x128x32xbf16>
    %285 = vector.shape_cast %284 : vector<1x128x32xbf16> to vector<128x32xbf16>
    %286 = arith.truncf %283 : vector<16x128xf32> to vector<16x128xbf16>
    %cst_109 = arith.constant dense<0.000000e+00> : vector<16x32xf32>
    %287 = tpu.matmul %286, %285, %cst_109 {dimension_numbers = #tpu.dot_dimension_numbers<[1], [0], [0], [1], [0, 0, 1, 1], [], []>} : vector<16x128xbf16>, vector<128x32xbf16>, vector<16x32xf32> -> vector<16x32xf32>
    %288 = arith.addf %236, %287 : vector<16x32xf32>
    %c1_110 = arith.constant 1 : index
    %c0_111 = arith.constant 0 : index
    %c0_112 = arith.constant 0 : index
    %289 = vector.load %arg14[%c1_110, %c0_111, %c0_112] : memref<2x1x32xf32, #tpu.memory_space<vmem>>, vector<1x1x32xf32>
    %290 = vector.shape_cast %289 : vector<1x1x32xf32> to vector<1x32xf32>
    %291 = vector.broadcast %290 : vector<1x32xf32> to vector<16x32xf32>
    %292 = arith.addf %288, %291 : vector<16x32xf32>
    %c0_113 = arith.constant 0 : index
    %c0_114 = arith.constant 0 : index
    %293 = vector.load %arg15[%c0_113, %c0_114] : memref<2x32xf32, #tpu.memory_space<vmem>>, vector<2x32xf32>
    %294 = vector.extract_strided_slice %293 {offsets = [0, 0], sizes = [1, 32], strides = [1, 1]} : vector<2x32xf32> to vector<1x32xf32>
    %295 = vector.extract_strided_slice %293 {offsets = [1, 0], sizes = [1, 32], strides = [1, 1]} : vector<2x32xf32> to vector<1x32xf32>
    %cst_115 = arith.constant dense<0.000000e+00> : vector<16xf32>
    %296 = vector.multi_reduction <add>, %292, %cst_115 [1] : vector<16x32xf32> to vector<16xf32>
    %297 = vector.shape_cast %296 : vector<16xf32> to vector<16x1xf32>
    %cst_116 = arith.constant 3.200000e+01 : f32
    %298 = vector.broadcast %cst_116 : f32 to vector<16x1xf32>
    %299 = arith.divf %297, %298 : vector<16x1xf32>
    %300 = vector.broadcast %299 : vector<16x1xf32> to vector<16x32xf32>
    %301 = arith.subf %292, %300 : vector<16x32xf32>
    %302 = arith.mulf %301, %301 : vector<16x32xf32>
    %cst_117 = arith.constant dense<0.000000e+00> : vector<16xf32>
    %303 = vector.multi_reduction <add>, %302, %cst_117 [1] : vector<16x32xf32> to vector<16xf32>
    %304 = vector.shape_cast %303 : vector<16xf32> to vector<16x1xf32>
    %cst_118 = arith.constant 3.200000e+01 : f32
    %305 = vector.broadcast %cst_118 : f32 to vector<16x1xf32>
    %306 = arith.divf %304, %305 : vector<16x1xf32>
    %307 = vector.broadcast %299 : vector<16x1xf32> to vector<16x32xf32>
    %308 = arith.subf %292, %307 : vector<16x32xf32>
    %cst_119 = arith.constant 9.99999974E-6 : f32
    %309 = vector.broadcast %cst_119 : f32 to vector<16x1xf32>
    %310 = arith.addf %306, %309 : vector<16x1xf32>
    %311 = math.rsqrt %310 : vector<16x1xf32>
    %312 = vector.broadcast %311 : vector<16x1xf32> to vector<16x32xf32>
    %313 = arith.mulf %308, %312 : vector<16x32xf32>
    %314 = vector.broadcast %294 : vector<1x32xf32> to vector<16x32xf32>
    %315 = arith.mulf %313, %314 : vector<16x32xf32>
    %316 = vector.broadcast %295 : vector<1x32xf32> to vector<16x32xf32>
    %317 = arith.addf %315, %316 : vector<16x32xf32>
    %c0_120 = arith.constant 0 : index
    %c0_121 = arith.constant 0 : index
    %318 = vector.load %arg16[%c0_120, %c0_121] : memref<32x128xbf16, #tpu.memory_space<vmem>>, vector<32x128xbf16>
    %319 = arith.truncf %317 : vector<16x32xf32> to vector<16x32xbf16>
    %cst_122 = arith.constant dense<0.000000e+00> : vector<16x128xf32>
    %320 = tpu.matmul %319, %318, %cst_122 {dimension_numbers = #tpu.dot_dimension_numbers<[1], [0], [0], [1], [0, 0, 1, 1], [], []>} : vector<16x32xbf16>, vector<32x128xbf16>, vector<16x128xf32> -> vector<16x128xf32>
    %c0_123 = arith.constant 0 : index
    %c0_124 = arith.constant 0 : index
    %321 = vector.load %arg17[%c0_123, %c0_124] : memref<16x128xf32, #tpu.memory_space<vmem>>, vector<16x128xf32>
    tpu.vector_store %arg17[%c0_123, %c0_124], %320 {strides = array<i32>} : memref<16x128xf32, #tpu.memory_space<vmem>>, vector<16x128xf32>,
    return
  }
  func.func @transform_0(%arg0: i32) -> (i32, i32) {
    %c0_i32 = arith.constant 0 : i32
    %c0_i32_0 = arith.constant 0 : i32
    %c0_i32_1 = arith.constant 0 : i32
    return %c0_i32, %c0_i32_0 : i32, i32
  }
  func.func @transform_1(%arg0: i32) -> (i32, i32) {
    %c0_i32 = arith.constant 0 : i32
    %c0_i32_0 = arith.constant 0 : i32
    %c0_i32_1 = arith.constant 0 : i32
    return %c0_i32, %c0_i32_0 : i32, i32
  }
  func.func @transform_2(%arg0: i32) -> (i32, i32) {
    %c0_i32 = arith.constant 0 : i32
    %c0_i32_0 = arith.constant 0 : i32
    %c0_i32_1 = arith.constant 0 : i32
    return %c0_i32, %c0_i32_0 : i32, i32
  }
  func.func @transform_3(%arg0: i32) -> (i32, i32) {
    %c0_i32 = arith.constant 0 : i32
    %c0_i32_0 = arith.constant 0 : i32
    %c0_i32_1 = arith.constant 0 : i32
    return %c0_i32, %c0_i32_0 : i32, i32
  }
  func.func @transform_4(%arg0: i32) -> (i32, i32, i32) {
    %c0_i32 = arith.constant 0 : i32
    %c0_i32_0 = arith.constant 0 : i32
    %c0_i32_1 = arith.constant 0 : i32
    %c0_i32_2 = arith.constant 0 : i32
    return %c0_i32, %c0_i32_0, %c0_i32_1 : i32, i32, i32
  }
  func.func @transform_5(%arg0: i32) -> (i32, i32, i32) {
    %c0_i32 = arith.constant 0 : i32
    %c0_i32_0 = arith.constant 0 : i32
    %c0_i32_1 = arith.constant 0 : i32
    %c0_i32_2 = arith.constant 0 : i32
    return %c0_i32, %c0_i32_0, %c0_i32_1 : i32, i32, i32
  }
  func.func @transform_6(%arg0: i32) -> (i32, i32, i32) {
    %c0_i32 = arith.constant 0 : i32
    %c0_i32_0 = arith.constant 0 : i32
    %c0_i32_1 = arith.constant 0 : i32
    %c0_i32_2 = arith.constant 0 : i32
    return %c0_i32, %c0_i32_0, %c0_i32_1 : i32, i32, i32
  }
  func.func @transform_7(%arg0: i32) -> (i32, i32, i32) {
    %c0_i32 = arith.constant 0 : i32
    %c0_i32_0 = arith.constant 0 : i32
    %c0_i32_1 = arith.constant 0 : i32
    %c0_i32_2 = arith.constant 0 : i32
    return %c0_i32, %c0_i32_0, %c0_i32_1 : i32, i32, i32
  }
  func.func @transform_8(%arg0: i32) -> (i32, i32, i32) {
    %c0_i32 = arith.constant 0 : i32
    %c0_i32_0 = arith.constant 0 : i32
    %c0_i32_1 = arith.constant 0 : i32
    %c0_i32_2 = arith.constant 0 : i32
    return %c0_i32, %c0_i32_0, %c0_i32_1 : i32, i32, i32
  }
  func.func @transform_9(%arg0: i32) -> (i32, i32, i32) {
    %c0_i32 = arith.constant 0 : i32
    %c0_i32_0 = arith.constant 0 : i32
    %c0_i32_1 = arith.constant 0 : i32
    %c0_i32_2 = arith.constant 0 : i32
    return %c0_i32, %c0_i32_0, %c0_i32_1 : i32, i32, i32
  }
  func.func @transform_10(%arg0: i32) -> (i32, i32, i32) {
    %c0_i32 = arith.constant 0 : i32
    %c0_i32_0 = arith.constant 0 : i32
    %c0_i32_1 = arith.constant 0 : i32
    %c0_i32_2 = arith.constant 0 : i32
    return %c0_i32, %c0_i32_0, %c0_i32_1 : i32, i32, i32
  }
  func.func @transform_11(%arg0: i32) -> (i32, i32, i32) {
    %c0_i32 = arith.constant 0 : i32
    %c0_i32_0 = arith.constant 0 : i32
    %c0_i32_1 = arith.constant 0 : i32
    %c0_i32_2 = arith.constant 0 : i32
    return %c0_i32, %c0_i32_0, %c0_i32_1 : i32, i32, i32
  }
  func.func @transform_12(%arg0: i32) -> (i32, i32, i32) {
    %c0_i32 = arith.constant 0 : i32
    %c0_i32_0 = arith.constant 0 : i32
    %c0_i32_1 = arith.constant 0 : i32
    %c0_i32_2 = arith.constant 0 : i32
    return %c0_i32, %c0_i32_0, %c0_i32_1 : i32, i32, i32
  }
  func.func @transform_13(%arg0: i32) -> (i32, i32, i32) {
    %c0_i32 = arith.constant 0 : i32
    %c0_i32_0 = arith.constant 0 : i32
    %c0_i32_1 = arith.constant 0 : i32
    %c0_i32_2 = arith.constant 0 : i32
    return %c0_i32, %c0_i32_0, %c0_i32_1 : i32, i32, i32
  }
  func.func @transform_14(%arg0: i32) -> (i32, i32) {
    %c0_i32 = arith.constant 0 : i32
    %c0_i32_0 = arith.constant 0 : i32
    %c0_i32_1 = arith.constant 0 : i32
    return %c0_i32, %c0_i32_0 : i32, i32
  }
  func.func @transform_15(%arg0: i32) -> (i32, i32) {
    %c0_i32 = arith.constant 0 : i32
    %c0_i32_0 = arith.constant 0 : i32
    %c0_i32_1 = arith.constant 0 : i32
    return %c0_i32, %c0_i32_0 : i32, i32
  }
  func.func @transform_16(%arg0: i32) -> (i32, i32) {
    %c0_i32 = arith.constant 0 : i32
    %c0_i32_0 = arith.constant 0 : i32
    %c0_i32_1 = arith.constant 0 : i32
    return %c0_i32, %c0_i32_0 : i32, i32
  }
}

</mosaic_0001>

<llo_original>
// kernel: gpt_forward.1
$region0: #{gpt_forward.1}
  #allocation0 [shape = 'u32[]', space=smem, size = 0x4, offset = 0x4, fixed_abs, tag = 'smem constant byte address 0x4 - core index']
  #allocation1 [shape = 'u32[72,128]{1,0:T(1,128)}', space=vmem, size = 0x9000, scoped, tag = 'internal scratch']
  %s0 = inlined_call_operand.vmem [shape: s32[16,1], index: 0, kind: input, shape index: {}]
  %s1 = inlined_call_operand.vmem [shape: bf16[144,32], index: 1, kind: input, shape index: {}]
  %s2 = inlined_call_operand.vmem [shape: f32[64,32], index: 2, kind: input, shape index: {}]
  %s3 = inlined_call_operand.vmem [shape: f32[64,16], index: 3, kind: input, shape index: {}]
  %s4 = inlined_call_operand.vmem [shape: f32[2,2,32], index: 4, kind: input, shape index: {}]
  %s5 = inlined_call_operand.vmem [shape: bf16[2,32,96], index: 5, kind: input, shape index: {}]
  %s6 = inlined_call_operand.vmem [shape: f32[2,1,96], index: 6, kind: input, shape index: {}]
  %s7 = inlined_call_operand.vmem [shape: bf16[2,32,32], index: 7, kind: input, shape index: {}]
  %s8 = inlined_call_operand.hbm [shape: f32[2,1,32], index: 8, kind: input, shape index: {}]
  %s9 = inlined_call_operand.vmem [shape: f32[2,2,32], index: 9, kind: input, shape index: {}]
  %s10 = inlined_call_operand.vmem [shape: bf16[2,32,128], index: 10, kind: input, shape index: {}]
  %s11 = inlined_call_operand.hbm [shape: f32[2,1,128], index: 11, kind: input, shape index: {}]
  %s12 = inlined_call_operand.vmem [shape: bf16[2,128,32], index: 12, kind: input, shape index: {}]
  %s13 = inlined_call_operand.vmem [shape: f32[2,1,32], index: 13, kind: input, shape index: {}]
  %s14 = inlined_call_operand.vmem [shape: f32[2,32], index: 14, kind: input, shape index: {}]
  %s15 = inlined_call_operand.vmem [shape: bf16[32,128], index: 15, kind: input, shape index: {}]
  %s16 = inlined_call_operand.hbm [shape: f32[16,128], index: 16, kind: output, shape index: {}]
  %s17 = sld [smem:[#allocation0]]
  $region82: #{gpt_forward.1} parent=0
    _
  %s19 = ssub.s32 1, %s17
  %s20 = scalar_select 0, %s19, %s17
  $region1: #{gpt_forward.1} parent=0
    #allocation2 [shape = 'u8[1024]{0}', space=vmem, size = 0x400, scoped, tag = 'input window, operand 8, single buffered']
    #allocation3 [shape = 's32[1]{0}', space=sflag, size = 0x4, scoped, tag = 'scoped memory for gpt_forward.1']
    #allocation4 [shape = 's32[1]{0}', space=sflag, size = 0x4, scoped, tag = 'scoped memory for gpt_forward.1']
    #allocation5 [shape = 'u8[1024]{0}', space=vmem, size = 0x400, scoped, tag = 'input window, operand 11, single buffered']
    #allocation6 [shape = 's32[1]{0}', space=sflag, size = 0x4, scoped, tag = 'scoped memory for gpt_forward.1']
    #allocation7 [shape = 'u8[8192]{0}', space=vmem, size = 0x2000, scoped, tag = 'output window, operand 0, single buffered']
    %21 = vsyncpa [#allocation3], 0
    %22 = vsyncpa [#allocation6], 0
    %23 = vsyncpa [#allocation4], 0
    // Predicated region
    $region2: #{gpt_forward.1} parent=1 // pred_check
      _
    $region3: #{gpt_forward.1} parent=1 // pred_check_branch
      %25 = sbr.rel (0) target = $region5
    $region4: #{gpt_forward.1} parent=1 // pred_region
      _
    $region5: #{gpt_forward.1} parent=1 // pred_fallthru
      _
    // Predicated region
    $region6: #{gpt_forward.1} parent=1 // pred_check
      _
    $region7: #{gpt_forward.1} parent=1 // pred_check_branch
      %27 = sbr.rel (0) target = $region9
    $region8: #{gpt_forward.1} parent=1 // pred_region
      _
    $region9: #{gpt_forward.1} parent=1 // pred_fallthru
      _
    // Predicated region
    $region10: #{gpt_forward.1} parent=1 // pred_check
      _
    $region11: #{gpt_forward.1} parent=1 // pred_check_branch
      %29 = sbr.rel (0) target = $region13
    $region12: #{gpt_forward.1} parent=1 // pred_region
      _
    $region13: #{gpt_forward.1} parent=1 // pred_fallthru
      _
    // Predicated region
    $region14: #{gpt_forward.1} parent=1 // pred_check
      _
    $region15: #{gpt_forward.1} parent=1 // pred_check_branch
      %31 = sbr.rel (0) target = $region17
    $region16: #{gpt_forward.1} parent=1 // pred_region
      _
    $region17: #{gpt_forward.1} parent=1 // pred_fallthru
      _
    // Predicated region
    $region18: #{gpt_forward.1} parent=1 // pred_check
      _
    $region19: #{gpt_forward.1} parent=1 // pred_check_branch
      %33 = sbr.rel (0) target = $region21
    $region20: #{gpt_forward.1} parent=1 // pred_region
      _
    $region21: #{gpt_forward.1} parent=1 // pred_fallthru
      _
    // Predicated region
    $region22: #{gpt_forward.1} parent=1 // pred_check
      _
    $region23: #{gpt_forward.1} parent=1 // pred_check_branch
      %35 = sbr.rel (0) target = $region25
    $region24: #{gpt_forward.1} parent=1 // pred_region
      _
    $region25: #{gpt_forward.1} parent=1 // pred_fallthru
      _
    // Predicated region
    $region26: #{gpt_forward.1} parent=1 // pred_check
      _
    $region27: #{gpt_forward.1} parent=1 // pred_check_branch
      %37 = sbr.rel (0) target = $region29
    $region28: #{gpt_forward.1} parent=1 // pred_region
      _
    $region29: #{gpt_forward.1} parent=1 // pred_fallthru
      _
    // Predicated region
    $region30: #{gpt_forward.1} parent=1 // pred_check
      _
    $region31: #{gpt_forward.1} parent=1 // pred_check_branch
      %39 = sbr.rel (0) target = $region33
    $region32: #{gpt_forward.1} parent=1 // pred_region
      _
    $region33: #{gpt_forward.1} parent=1 // pred_fallthru
      _
    // Predicated region
    $region34: #{gpt_forward.1} parent=1 // pred_check
      _
    $region35: #{gpt_forward.1} parent=1 // pred_check_branch
      %41 = sbr.rel (0) target = $region37
    $region36: #{gpt_forward.1} parent=1 // pred_region
      %43 = vsyncadd [#allocation3], 0
      %s44 = sshll.u32 %s8, 4
      %s45 = int_to_ptr.hbm [resolvable:$true] %s44
      %s46 = sshll.u32 [#allocation2], 4
      %s47 = int_to_ptr.vmem [resolvable:$true] %s46
      %52 = dma.hbm_to_vmem [thread:$0]  %s45, 32, %s47, [#allocation3], 16, 16, 1
    $region37: #{gpt_forward.1} parent=1 // pred_fallthru
      _
    // Predicated region
    $region38: #{gpt_forward.1} parent=1 // pred_check
      _
    $region39: #{gpt_forward.1} parent=1 // pred_check_branch
      %54 = sbr.rel (0) target = $region41
    $region40: #{gpt_forward.1} parent=1 // pred_region
      _
    $region41: #{gpt_forward.1} parent=1 // pred_fallthru
      _
    // Predicated region
    $region42: #{gpt_forward.1} parent=1 // pred_check
      _
    $region43: #{gpt_forward.1} parent=1 // pred_check_branch
      %56 = sbr.rel (0) target = $region45
    $region44: #{gpt_forward.1} parent=1 // pred_region
      _
    $region45: #{gpt_forward.1} parent=1 // pred_fallthru
      _
    // Predicated region
    $region46: #{gpt_forward.1} parent=1 // pred_check
      _
    $region47: #{gpt_forward.1} parent=1 // pred_check_branch
      %58 = sbr.rel (0) target = $region49
    $region48: #{gpt_forward.1} parent=1 // pred_region
      %60 = vsyncadd [#allocation6], 0
      %s61 = sshll.u32 %s11, 4
      %s62 = int_to_ptr.hbm [resolvable:$true] %s61
      %s63 = sshll.u32 [#allocation5], 4
      %s64 = int_to_ptr.vmem [resolvable:$true] %s63
      %69 = dma.hbm_to_vmem [thread:$0]  %s62, 32, %s64, [#allocation6], 16, 16, 1
    $region49: #{gpt_forward.1} parent=1 // pred_fallthru
      _
    // Predicated region
    $region50: #{gpt_forward.1} parent=1 // pred_check
      _
    $region51: #{gpt_forward.1} parent=1 // pred_check_branch
      %71 = sbr.rel (0) target = $region53
    $region52: #{gpt_forward.1} parent=1 // pred_region
      _
    $region53: #{gpt_forward.1} parent=1 // pred_fallthru
      _
    // Predicated region
    $region54: #{gpt_forward.1} parent=1 // pred_check
      _
    $region55: #{gpt_forward.1} parent=1 // pred_check_branch
      %73 = sbr.rel (0) target = $region57
    $region56: #{gpt_forward.1} parent=1 // pred_region
      _
    $region57: #{gpt_forward.1} parent=1 // pred_fallthru
      _
    // Predicated region
    $region58: #{gpt_forward.1} parent=1 // pred_check
      _
    $region59: #{gpt_forward.1} parent=1 // pred_check_branch
      %75 = sbr.rel (0) target = $region61
    $region60: #{gpt_forward.1} parent=1 // pred_region
      _
    $region61: #{gpt_forward.1} parent=1 // pred_fallthru
      _
    // Predicated region
    $region62: #{gpt_forward.1} parent=1 // pred_check
      _
    $region63: #{gpt_forward.1} parent=1 // pred_check_branch
      %77 = sbr.rel (0) target = $region65
    $region64: #{gpt_forward.1} parent=1 // pred_region
      _
    $region65: #{gpt_forward.1} parent=1 // pred_fallthru
      _
    // Predicated region
    $region66: #{gpt_forward.1} parent=1 // pred_check
      _
    $region67: #{gpt_forward.1} parent=1 // pred_check_branch
      %79 = sbr.rel (0) target = $region69
    $region68: #{gpt_forward.1} parent=1 // pred_region
      %81 = dma.done [#allocation3], 32
    $region69: #{gpt_forward.1} parent=1 // pred_fallthru
      _
    // Predicated region
    $region70: #{gpt_forward.1} parent=1 // pred_check
      _
    $region71: #{gpt_forward.1} parent=1 // pred_check_branch
      %83 = sbr.rel (0) target = $region73
    $region72: #{gpt_forward.1} parent=1 // pred_region
      %85 = dma.done [#allocation6], 32
    $region73: #{gpt_forward.1} parent=1 // pred_fallthru
      _
    %v87 = vld [vmem:[%s0] sm:$0xff]
    %v88 = vld [vmem:[%s0 + $0x8] sm:$0xff]
    %v89 = vlaneseq
    %v90 = vand.u32 %v89, 127
    %91 = vset.pattern.permute.xlu0 0
    %92 = vperm.xlu0 %91, %v87
    %v93 = vpop.permute.xlu0 %92
    %94 = vset.pattern.permute.xlu0 0
    %95 = vperm.xlu0 %94, %v88
    %v96 = vpop.permute.xlu0 %95
    %vm97 = vcmp.eq.s32.totalorder %v90, %v93
    %vm98 = vcmp.eq.s32.totalorder %v90, %v96
    %v99 = vsel %vm97, 1, 0
    %v100 = vsel %vm98, 1, 0
    %v101 = vcvt.s32.f32 %v99
    %v102 = vcvt.s32.f32 %v100
    %v103 = vlaneseq
    %v104 = vshrl.u32 %v103, 7
    %v105 = vadd.s32 %v104, 8
    %vm106 = vcmp.lt.s32.totalorder %v104, 0
    %v107 = vsub.s32 0, %v104
    %v108 = vsel %vm106, %v107, %v104
    %v109 = vshrl.u32 %v108, 3
    %v110 = vand.u32 %v108, 7
    %v111 = vsub.s32 0, %v110
    %v112 = vsel %vm106, %v111, %v110
    %vm113 = vcmp.lt.s32.totalorder %v105, 0
    %v114 = vsub.s32 0, %v105
    %v115 = vsel %vm113, %v114, %v105
    %v116 = vshrl.u32 %v115, 3
    %v117 = vand.u32 %v115, 7
    %v118 = vsub.s32 0, %v117
    %v119 = vsel %vm113, %v118, %v117
    %vm120 = vcmp.ne.s32.totalorder %v112, 0
    %vm121 = vcmp.ne.s32.totalorder %v119, 0
    %vm122 = vcmp.lt.s32.totalorder %v112, 0
    %vm123 = vcmp.lt.s32.totalorder %v119, 0
    %vm124 = vmand %vm122, %vm120
    %vm125 = vmand %vm123, %vm121
    %v126 = vadd.s32 %v112, 8
    %v127 = vadd.s32 %v119, 8
    %v128 = vsel %vm124, %v126, %v112
    %v129 = vsel %vm125, %v127, %v119
    %vm130 = vcmp.eq.s32.totalorder %v90, %v128
    %vm131 = vcmp.eq.s32.totalorder %v90, %v129
    %v132 = vsel %vm130, 1, 0
    %v133 = vsel %vm131, 1, 0
    %v134 = vcvt.s32.f32 %v132
    %v135 = vcvt.s32.f32 %v133
    %v136 = vld [vmem:[%s1] sm:$0xf]
    %v137 = vld [vmem:[%s1 + $0x4] sm:$0xf]
    %v138 = vld [vmem:[%s1 + $0x8] sm:$0xf]
    %v139 = vld [vmem:[%s1 + $0xc] sm:$0xf]
    %v140 = vld [vmem:[%s1 + $0x10] sm:$0xf]
    %v141 = vld [vmem:[%s1 + $0x14] sm:$0xf]
    %v142 = vld [vmem:[%s1 + $0x18] sm:$0xf]
    %v143 = vld [vmem:[%s1 + $0x1c] sm:$0xf]
    %v144 = vld [vmem:[%s1 + $0x20] sm:$0xf]
    %v145 = vld [vmem:[%s1 + $0x24] sm:$0xf]
    %v146 = vld [vmem:[%s1 + $0x28] sm:$0xf]
    %v147 = vld [vmem:[%s1 + $0x2c] sm:$0xf]
    %v148 = vld [vmem:[%s1 + $0x30] sm:$0xf]
    %v149 = vld [vmem:[%s1 + $0x34] sm:$0xf]
    %v150 = vld [vmem:[%s1 + $0x38] sm:$0xf]
    %v151 = vld [vmem:[%s1 + $0x3c] sm:$0xf]
    %v152 = vld [vmem:[%s1 + $0x40] sm:$0xf]
    %v153 = vld [vmem:[%s1 + $0x44] sm:$0xf]
    %v154 = vpack.c.bf16 %v102, %v101
    %v155 = vpack.c.bf16 %v135, %v134
    %v174 = vunpack.c.l.b16 %v136
    %v175 = vunpack.c.l.b16 %v137
    %v176 = vunpack.c.l.b16 %v138
    %v177 = vunpack.c.l.b16 %v139
    %v178 = vunpack.c.l.b16 %v140
    %v179 = vunpack.c.l.b16 %v141
    %v180 = vunpack.c.l.b16 %v142
    %v181 = vunpack.c.l.b16 %v143
    %v182 = vunpack.c.l.b16 %v144
    %v183 = vunpack.c.l.b16 %v145
    %v184 = vunpack.c.l.b16 %v146
    %v185 = vunpack.c.l.b16 %v147
    %v186 = vunpack.c.l.b16 %v148
    %v187 = vunpack.c.l.b16 %v149
    %v188 = vunpack.c.l.b16 %v150
    %v189 = vunpack.c.l.b16 %v151
    %v190 = vunpack.c.l.b16 %v152
    %v191 = vunpack.c.l.b16 %v153
    %v192 = vpack.c.b16 %v175, %v174
    %v193 = vpack.c.b16 %v177, %v176
    %v194 = vpack.c.b16 %v179, %v178
    %v195 = vpack.c.b16 %v181, %v180
    %v196 = vpack.c.b16 %v183, %v182
    %v197 = vpack.c.b16 %v185, %v184
    %v198 = vpack.c.b16 %v187, %v186
    %v199 = vpack.c.b16 %v189, %v188
    %v200 = vpack.c.b16 %v191, %v190
    %vm210 = vcmask 130048
    %v212 = vsel %vm210, %v155, 0
    %214 = vmatpush.bf16.msra.mxu0 %v199
    %215 = vmatpush.bf16.msra.mxu0 %v198
    %216 = vmatpush.bf16.msra.mxu0 %v197
    %217 = vmatpush.bf16.msra.mxu0 %v196
    %218 = vmatpush.bf16.msra.mxu0 %v195
    %219 = vmatpush.bf16.msra.mxu0 %v194
    %220 = vmatpush.bf16.msra.mxu0 %v193
    %221 = vmatpush.bf16.msra.mxu0 %v192
    %222 = vmatmul.bf16.gmra.mxu0 %v154
    %v223 = vpop.f32.mrf.mxu0
    %v224 = vadd.f32 0.0, %v223
    %v225 = vpop.f32.mrf.mxu0
    %v226 = vadd.f32 0.0, %v225
    %227 = vdwg.mxu0
    %228 = vmatpush.bf16.msra.mxu0 0
    %229 = vmatpush.bf16.msra.mxu0 0
    %230 = vmatpush.bf16.msra.mxu0 0
    %231 = vmatpush.bf16.msra.mxu0 0
    %232 = vmatpush.bf16.msra.mxu0 0
    %233 = vmatpush.bf16.msra.mxu0 0
    %234 = vmatpush.bf16.msra.mxu0 0
    %235 = vmatpush.bf16.msra.mxu0 %v200
    %236 = vmatmul.bf16.gmra.mxu0 %v212
    %v237 = vpop.f32.mrf.mxu0
    %v238 = vadd.f32 %v224, %v237
    %v239 = vpop.f32.mrf.mxu0
    %v240 = vadd.f32 %v226, %v239
    %241 = vdwg.mxu0
    %v242 = vld [vmem:[%s2] sm:$0xff]
    %v243 = vld [vmem:[%s2 + $0x8] sm:$0xff]
    %v244 = vld [vmem:[%s2 + $0x10] sm:$0xff]
    %v245 = vld [vmem:[%s2 + $0x18] sm:$0xff]
    %v246 = vld [vmem:[%s2 + $0x20] sm:$0xff]
    %v247 = vld [vmem:[%s2 + $0x28] sm:$0xff]
    %v248 = vld [vmem:[%s2 + $0x30] sm:$0xff]
    %v249 = vld [vmem:[%s2 + $0x38] sm:$0xff]
    %v250 = vld [vmem:[%s3] sm:$0xff]
    %v251 = vld [vmem:[%s3 + $0x8] sm:$0xff]
    %v252 = vld [vmem:[%s3 + $0x10] sm:$0xff]
    %v253 = vld [vmem:[%s3 + $0x18] sm:$0xff]
    %v254 = vld [vmem:[%s3 + $0x20] sm:$0xff]
    %v255 = vld [vmem:[%s3 + $0x28] sm:$0xff]
    %v256 = vld [vmem:[%s3 + $0x30] sm:$0xff]
    %v257 = vld [vmem:[%s3 + $0x38] sm:$0xff]
    %v258 = vld [vmem:[%s4] sm:$0x3]
    %vm259 = vcmask 261120
    %v260 = vsel %vm259, %v238, 0.0
    %261 = vadd.xlane.f32.xlu0 %v260
    %v262 = vpop.xlane.xlu0 %261
    %v263 = vsel %vm259, %v240, 0.0
    %264 = vadd.xlane.f32.xlu0 %v263
    %v265 = vpop.xlane.xlu0 %264
    %v266 = vrcp.pop 32.0
    %v267 = vmul.f32 32.0, %v266
    %v268 = vsub.f32 1.0, %v267
    %v269 = vmul.f32 %v266, %v268
    %v270 = vadd.f32 %v266, %v269
    %vm271 = vweird.f32 %v266
    %v272 = vsel %vm271, %v266, %v270
    %v273 = vmul.f32 %v262, %v272
    %v274 = vmul.f32 %v265, %v272
    %v275 = vsub.f32 %v238, %v273
    %v276 = vsub.f32 %v240, %v274
    %v277 = vmul.f32 %v275, %v275
    %v278 = vmul.f32 %v276, %v276
    %v279 = vsel %vm259, %v277, 0.0
    %280 = vadd.xlane.f32.xlu0 %v279
    %v281 = vpop.xlane.xlu0 %280
    %v282 = vsel %vm259, %v278, 0.0
    %283 = vadd.xlane.f32.xlu0 %v282
    %v284 = vpop.xlane.xlu0 %283
    %v285 = vmul.f32 %v281, %v272
    %v286 = vmul.f32 %v284, %v272
    %v287 = vadd.f32 %v285, 1e-05
    %v288 = vadd.f32 %v286, 1e-05
    %v289 = vrsqrt.pop %v287
    %v290 = vmul.f32 %v289, %v287
    %v291 = vmul.f32 %v290, %v289
    %v292 = vmul.f32 0.5, %v291
    %v293 = vsub.f32 1.5, %v292
    %v294 = vmul.f32 %v289, %v293
    %vm295 = vweird.f32 %v287
    %vm296 = vweird.f32 %v289
    %vm297 = vmor %vm295, %vm296
    %v298 = vsel %vm297, %v289, %v294
    %v299 = vrsqrt.pop %v288
    %v300 = vmul.f32 %v299, %v288
    %v301 = vmul.f32 %v300, %v299
    %v302 = vmul.f32 0.5, %v301
    %v303 = vsub.f32 1.5, %v302
    %v304 = vmul.f32 %v299, %v303
    %vm305 = vweird.f32 %v288
    %vm306 = vweird.f32 %v299
    %vm307 = vmor %vm305, %vm306
    %v308 = vsel %vm307, %v299, %v304
    %v309 = vmul.f32 %v275, %v298
    %v310 = vmul.f32 %v276, %v308
    %v311 = vperm.slane %v258, 0
    %v312 = vmul.f32 %v309, %v311
    %v313 = vmul.f32 %v310, %v311
    %v314 = vperm.slane %v258, 1
    %v315 = vadd.f32 %v312, %v314
    %v316 = vadd.f32 %v313, %v314
    %v317 = vld [vmem:[%s5] sm:$0xf]
    %v318 = vld [vmem:[%s5 + $0x4] sm:$0xf]
    %v319 = vld [vmem:[%s5 + $0x8] sm:$0xf]
    %v320 = vld [vmem:[%s5 + $0xc] sm:$0xf]
    %v321 = vpack.c.bf16 %v316, %v315
    %v322 = vld [vmem:[%s6] sm:$0x1]
    %v324 = vperm.slane %v322, 0
    %v330 = vunpack.c.l.b16 %v317
    %v331 = vunpack.c.l.b16 %v318
    %v332 = vunpack.c.l.b16 %v319
    %v333 = vunpack.c.l.b16 %v320
    %v334 = vpack.c.b16 %v331, %v330
    %v335 = vpack.c.b16 %v333, %v332
    %v339 = vsel %vm259, %v321, 0
    %341 = vmatpush.bf16.msra.mxu0 0
    %342 = vmatpush.bf16.msra.mxu0 0
    %343 = vmatpush.bf16.msra.mxu0 0
    %344 = vmatpush.bf16.msra.mxu0 0
    %345 = vmatpush.bf16.msra.mxu0 0
    %346 = vmatpush.bf16.msra.mxu0 0
    %347 = vmatpush.bf16.msra.mxu0 %v335
    %348 = vmatpush.bf16.msra.mxu0 %v334
    %349 = vmatmul.bf16.gmra.mxu0 %v339
    %v350 = vpop.f32.mrf.mxu0
    %v351 = vadd.f32 %v324, %v350
    %v352 = vpop.f32.mrf.mxu0
    %v353 = vadd.f32 %v324, %v352
    %354 = vdwg.mxu0
    %357 = vrot.lane.b32.xlu0 %v351, 96
    %v358 = vpop.permute.xlu0 %357
    %359 = vrot.lane.b32.xlu0 %v353, 96
    %v360 = vpop.permute.xlu0 %359
    %363 = vxpose.xlu0.b32.start [1/16] %v358, 128
    %364 = vxpose.xlu0.b32.cont [2/16] %v360, 128
    %365 = vxpose.xlu0.b32.cont [3/16] 0.0, 128
    %366 = vxpose.xlu0.b32.cont [4/16] 0.0, 128
    %367 = vxpose.xlu0.b32.cont [5/16] 0.0, 128
    %368 = vxpose.xlu0.b32.cont [6/16] 0.0, 128
    %369 = vxpose.xlu0.b32.cont [7/16] 0.0, 128
    %370 = vxpose.xlu0.b32.cont [8/16] 0.0, 128
    %371 = vxpose.xlu0.b32.cont [9/16] 0.0, 128
    %372 = vxpose.xlu0.b32.cont [10/16] 0.0, 128
    %373 = vxpose.xlu0.b32.cont [11/16] 0.0, 128
    %374 = vxpose.xlu0.b32.cont [12/16] 0.0, 128
    %375 = vxpose.xlu0.b32.cont [13/16] 0.0, 128
    %376 = vxpose.xlu0.b32.cont [14/16] 0.0, 128
    %377 = vxpose.xlu0.b32.cont [15/16] 0.0, 128
    %378 = vxpose.xlu0.b32.end [16/16] 0.0, 128
    %v379 = vpop.trf.xlu0
    %v380 = vpop.trf.xlu0
    %v381 = vpop.trf.xlu0
    %v382 = vpop.trf.xlu0
    %v383 = vpop.trf.xlu0
    %v384 = vpop.trf.xlu0
    %v385 = vpop.trf.xlu0
    %v386 = vpop.trf.xlu0
    %v387 = vpop.trf.xlu0
    %v388 = vpop.trf.xlu0
    %v389 = vpop.trf.xlu0
    %v390 = vpop.trf.xlu0
    %v391 = vpop.trf.xlu0
    %v392 = vpop.trf.xlu0
    %v393 = vpop.trf.xlu0
    %v394 = vpop.trf.xlu0
    %v395 = vmul.f32 %v351, %v242
    %v396 = vmul.f32 %v353, %v243
    %v397 = vmul.f32 %v351, %v244
    %v398 = vmul.f32 %v353, %v245
    %v399 = vmul.f32 %v351, %v246
    %v400 = vmul.f32 %v353, %v247
    %v401 = vmul.f32 %v351, %v248
    %v402 = vmul.f32 %v353, %v249
    %v403 = vpack.c.bf16 %v396, %v395
    %v404 = vpack.c.bf16 %v398, %v397
    %v405 = vpack.c.bf16 %v400, %v399
    %v406 = vpack.c.bf16 %v402, %v401
    %v407 = vpack.c.bf16 %v380, %v379
    %v408 = vpack.c.bf16 %v382, %v381
    %v410 = vsel %vm259, %v403, 0
    %v413 = vsel %vm259, %v404, 0
    %v416 = vsel %vm259, %v405, 0
    %v419 = vsel %vm259, %v406, 0
    %421 = vmatpush.bf16.msra.mxu0 0
    %422 = vmatpush.bf16.msra.mxu0 0
    %423 = vmatpush.bf16.msra.mxu0 0
    %424 = vmatpush.bf16.msra.mxu0 0
    %425 = vmatpush.bf16.msra.mxu0 0
    %426 = vmatpush.bf16.msra.mxu0 0
    %427 = vmatpush.bf16.msra.mxu0 %v408
    %428 = vmatpush.bf16.msra.mxu0 %v407
    %429 = vmatmul.bf16.gmra.mxu0 %v410
    %v430 = vpop.f32.mrf.mxu0
    %v431 = vadd.f32 %v250, %v430
    %v432 = vpop.f32.mrf.mxu0
    %v433 = vadd.f32 %v251, %v432
    %434 = vmatmul.bf16.gmra.mxu0 %v413
    %v435 = vpop.f32.mrf.mxu0
    %v436 = vadd.f32 %v252, %v435
    %v437 = vpop.f32.mrf.mxu0
    %v438 = vadd.f32 %v253, %v437
    %439 = vmatmul.bf16.gmra.mxu0 %v416
    %v440 = vpop.f32.mrf.mxu0
    %v441 = vadd.f32 %v254, %v440
    %v442 = vpop.f32.mrf.mxu0
    %v443 = vadd.f32 %v255, %v442
    %444 = vmatmul.bf16.gmra.mxu0 %v419
    %v445 = vpop.f32.mrf.mxu0
    %v446 = vadd.f32 %v256, %v445
    %v447 = vpop.f32.mrf.mxu0
    %v448 = vadd.f32 %v257, %v447
    %449 = vdwg.mxu0
    %v450 = vsel %vm210, %v431, -inf
    %451 = vmax.xlane.f32.xlu0 %v450
    %v452 = vpop.xlane.xlu0 %451
    %v453 = vsel %vm210, %v433, -inf
    %454 = vmax.xlane.f32.xlu0 %v453
    %v455 = vpop.xlane.xlu0 %454
    %v456 = vsel %vm210, %v436, -inf
    %457 = vmax.xlane.f32.xlu0 %v456
    %v458 = vpop.xlane.xlu0 %457
    %v459 = vsel %vm210, %v438, -inf
    %460 = vmax.xlane.f32.xlu0 %v459
    %v461 = vpop.xlane.xlu0 %460
    %v462 = vsel %vm210, %v441, -inf
    %463 = vmax.xlane.f32.xlu0 %v462
    %v464 = vpop.xlane.xlu0 %463
    %v465 = vsel %vm210, %v443, -inf
    %466 = vmax.xlane.f32.xlu0 %v465
    %v467 = vpop.xlane.xlu0 %466
    %v468 = vsel %vm210, %v446, -inf
    %469 = vmax.xlane.f32.xlu0 %v468
    %v470 = vpop.xlane.xlu0 %469
    %v471 = vsel %vm210, %v448, -inf
    %472 = vmax.xlane.f32.xlu0 %v471
    %v473 = vpop.xlane.xlu0 %472
    %v474 = vsub.f32 %v431, %v452
    %v475 = vsub.f32 %v433, %v455
    %v476 = vsub.f32 %v436, %v458
    %v477 = vsub.f32 %v438, %v461
    %v478 = vsub.f32 %v441, %v464
    %v479 = vsub.f32 %v443, %v467
    %v480 = vsub.f32 %v446, %v470
    %v481 = vsub.f32 %v448, %v473
    %v482 = vmul.f32 %v474, 1.442695
    %v483 = vpow.pop %v482
    %v484 = vmul.f32 %v475, 1.442695
    %v485 = vpow.pop %v484
    %v486 = vmul.f32 %v476, 1.442695
    %v487 = vpow.pop %v486
    %v488 = vmul.f32 %v477, 1.442695
    %v489 = vpow.pop %v488
    %v490 = vmul.f32 %v478, 1.442695
    %v491 = vpow.pop %v490
    %v492 = vmul.f32 %v479, 1.442695
    %v493 = vpow.pop %v492
    %v494 = vmul.f32 %v480, 1.442695
    %v495 = vpow.pop %v494
    %v496 = vmul.f32 %v481, 1.442695
    %v497 = vpow.pop %v496
    %v498 = vsel %vm210, %v483, 0.0
    %499 = vadd.xlane.f32.xlu0 %v498
    %v500 = vpop.xlane.xlu0 %499
    %v501 = vsel %vm210, %v485, 0.0
    %502 = vadd.xlane.f32.xlu0 %v501
    %v503 = vpop.xlane.xlu0 %502
    %v504 = vsel %vm210, %v487, 0.0
    %505 = vadd.xlane.f32.xlu0 %v504
    %v506 = vpop.xlane.xlu0 %505
    %v507 = vsel %vm210, %v489, 0.0
    %508 = vadd.xlane.f32.xlu0 %v507
    %v509 = vpop.xlane.xlu0 %508
    %v510 = vsel %vm210, %v491, 0.0
    %511 = vadd.xlane.f32.xlu0 %v510
    %v512 = vpop.xlane.xlu0 %511
    %v513 = vsel %vm210, %v493, 0.0
    %514 = vadd.xlane.f32.xlu0 %v513
    %v515 = vpop.xlane.xlu0 %514
    %v516 = vsel %vm210, %v495, 0.0
    %517 = vadd.xlane.f32.xlu0 %v516
    %v518 = vpop.xlane.xlu0 %517
    %v519 = vsel %vm210, %v497, 0.0
    %520 = vadd.xlane.f32.xlu0 %v519
    %v521 = vpop.xlane.xlu0 %520
    %v522 = vrcp.pop %v500
    %v523 = vrcp.pop %v503
    %v524 = vrcp.pop %v506
    %v525 = vrcp.pop %v509
    %v526 = vrcp.pop %v512
    %v527 = vrcp.pop %v515
    %v528 = vrcp.pop %v518
    %v529 = vrcp.pop %v521
    %v530 = vmul.f32 %v483, %v522
    %v531 = vmul.f32 %v485, %v523
    %v532 = vmul.f32 %v487, %v524
    %v533 = vmul.f32 %v489, %v525
    %v534 = vmul.f32 %v491, %v526
    %v535 = vmul.f32 %v493, %v527
    %v536 = vmul.f32 %v495, %v528
    %v537 = vmul.f32 %v497, %v529
    %v538 = vpack.c.bf16 %v531, %v530
    %v539 = vpack.c.bf16 %v533, %v532
    %v540 = vpack.c.bf16 %v535, %v534
    %v541 = vpack.c.bf16 %v537, %v536
    %v542 = vpack.c.bf16 %v353, %v351
    %544 = vrot.lane.b32.xlu0 %v542, 64
    %v545 = vpop.permute.xlu0 %544
    %v548 = vsel %vm210, %v538, 0
    %v551 = vsel %vm210, %v539, 0
    %v554 = vsel %vm210, %v540, 0
    %v557 = vsel %vm210, %v541, 0
    %559 = vmatpush.bf16.msra.mxu0 0
    %560 = vmatpush.bf16.msra.mxu0 0
    %561 = vmatpush.bf16.msra.mxu0 0
    %562 = vmatpush.bf16.msra.mxu0 0
    %563 = vmatpush.bf16.msra.mxu0 0
    %564 = vmatpush.bf16.msra.mxu0 0
    %565 = vmatpush.bf16.msra.mxu0 0
    %566 = vmatpush.bf16.msra.mxu0 %v545
    %567 = vmatmul.bf16.gmra.mxu0 %v548
    %v568 = vpop.f32.mrf.mxu0
    %v569 = vadd.f32 0.0, %v568
    %v570 = vpop.f32.mrf.mxu0
    %v571 = vadd.f32 0.0, %v570
    %572 = vmatmul.bf16.gmra.mxu0 %v551
    %v573 = vpop.f32.mrf.mxu0
    %v574 = vadd.f32 0.0, %v573
    %v575 = vpop.f32.mrf.mxu0
    %v576 = vadd.f32 0.0, %v575
    %577 = vmatmul.bf16.gmra.mxu0 %v554
    %v578 = vpop.f32.mrf.mxu0
    %v579 = vadd.f32 0.0, %v578
    %v580 = vpop.f32.mrf.mxu0
    %v581 = vadd.f32 0.0, %v580
    %582 = vmatmul.bf16.gmra.mxu0 %v557
    %v583 = vpop.f32.mrf.mxu0
    %v584 = vadd.f32 0.0, %v583
    %v585 = vpop.f32.mrf.mxu0
    %v586 = vadd.f32 0.0, %v585
    %587 = vdwg.mxu0
    %v588 = vmul.f32 %v569, %v242
    %v589 = vmul.f32 %v571, %v243
    %v590 = vmul.f32 %v574, %v244
    %v591 = vmul.f32 %v576, %v245
    %v592 = vmul.f32 %v579, %v246
    %v593 = vmul.f32 %v581, %v247
    %v594 = vmul.f32 %v584, %v248
    %v595 = vmul.f32 %v586, %v249
    %v596 = vadd.f32 %v588, %v590
    %v597 = vadd.f32 %v589, %v591
    %v598 = vadd.f32 %v596, %v592
    %v599 = vadd.f32 %v597, %v593
    %v600 = vadd.f32 %v598, %v594
    %v601 = vadd.f32 %v599, %v595
    %v602 = vld [vmem:[%s7] sm:$0xf]
    %v603 = vld [vmem:[%s7 + $0x4] sm:$0xf]
    %v604 = vld [vmem:[%s7 + $0x8] sm:$0xf]
    %v605 = vld [vmem:[%s7 + $0xc] sm:$0xf]
    %v606 = vpack.c.bf16 %v601, %v600
    %v611 = vunpack.c.l.b16 %v602
    %v612 = vunpack.c.l.b16 %v603
    %v613 = vunpack.c.l.b16 %v604
    %v614 = vunpack.c.l.b16 %v605
    %v615 = vpack.c.b16 %v612, %v611
    %v616 = vpack.c.b16 %v614, %v613
    %v620 = vsel %vm259, %v606, 0
    %622 = vmatpush.bf16.msra.mxu0 0
    %623 = vmatpush.bf16.msra.mxu0 0
    %624 = vmatpush.bf16.msra.mxu0 0
    %625 = vmatpush.bf16.msra.mxu0 0
    %626 = vmatpush.bf16.msra.mxu0 0
    %627 = vmatpush.bf16.msra.mxu0 0
    %628 = vmatpush.bf16.msra.mxu0 %v616
    %629 = vmatpush.bf16.msra.mxu0 %v615
    %630 = vmatmul.bf16.gmra.mxu0 %v620
    %v631 = vpop.f32.mrf.mxu0
    %v632 = vadd.f32 0.0, %v631
    %v633 = vpop.f32.mrf.mxu0
    %v634 = vadd.f32 0.0, %v633
    %635 = vdwg.mxu0
    %v636 = vadd.f32 %v238, %v632
    %v637 = vadd.f32 %v240, %v634
    %v638 = vld [vmem:[#allocation2] sm:$0x1]
    %v640 = vperm.slane %v638, 0
    %v642 = vadd.f32 %v636, %v640
    %v643 = vadd.f32 %v637, %v640
    %v644 = vld [vmem:[%s9] sm:$0x3]
    %v645 = vsel %vm259, %v642, 0.0
    %646 = vadd.xlane.f32.xlu0 %v645
    %v647 = vpop.xlane.xlu0 %646
    %v648 = vsel %vm259, %v643, 0.0
    %649 = vadd.xlane.f32.xlu0 %v648
    %v650 = vpop.xlane.xlu0 %649
    %v651 = vmul.f32 %v647, %v272
    %v652 = vmul.f32 %v650, %v272
    %v653 = vsub.f32 %v642, %v651
    %v654 = vsub.f32 %v643, %v652
    %v655 = vmul.f32 %v653, %v653
    %v656 = vmul.f32 %v654, %v654
    %v657 = vsel %vm259, %v655, 0.0
    %658 = vadd.xlane.f32.xlu0 %v657
    %v659 = vpop.xlane.xlu0 %658
    %v660 = vsel %vm259, %v656, 0.0
    %661 = vadd.xlane.f32.xlu0 %v660
    %v662 = vpop.xlane.xlu0 %661
    %v663 = vmul.f32 %v659, %v272
    %v664 = vmul.f32 %v662, %v272
    %v665 = vadd.f32 %v663, 1e-05
    %v666 = vadd.f32 %v664, 1e-05
    %v667 = vrsqrt.pop %v665
    %v668 = vmul.f32 %v667, %v665
    %v669 = vmul.f32 %v668, %v667
    %v670 = vmul.f32 0.5, %v669
    %v671 = vsub.f32 1.5, %v670
    %v672 = vmul.f32 %v667, %v671
    %vm673 = vweird.f32 %v665
    %vm674 = vweird.f32 %v667
    %vm675 = vmor %vm673, %vm674
    %v676 = vsel %vm675, %v667, %v672
    %v677 = vrsqrt.pop %v666
    %v678 = vmul.f32 %v677, %v666
    %v679 = vmul.f32 %v678, %v677
    %v680 = vmul.f32 0.5, %v679
    %v681 = vsub.f32 1.5, %v680
    %v682 = vmul.f32 %v677, %v681
    %vm683 = vweird.f32 %v666
    %vm684 = vweird.f32 %v677
    %vm685 = vmor %vm683, %vm684
    %v686 = vsel %vm685, %v677, %v682
    %v687 = vmul.f32 %v653, %v676
    %v688 = vmul.f32 %v654, %v686
    %v689 = vperm.slane %v644, 0
    %v690 = vmul.f32 %v687, %v689
    %v691 = vmul.f32 %v688, %v689
    %v692 = vperm.slane %v644, 1
    %v693 = vadd.f32 %v690, %v692
    %v694 = vadd.f32 %v691, %v692
    %v695 = vld [vmem:[%s10] sm:$0xf]
    %v696 = vld [vmem:[%s10 + $0x4] sm:$0xf]
    %v697 = vld [vmem:[%s10 + $0x8] sm:$0xf]
    %v698 = vld [vmem:[%s10 + $0xc] sm:$0xf]
    %v699 = vpack.c.bf16 %v694, %v693
    %v700 = vld [vmem:[#allocation5] sm:$0x1]
    %v702 = vperm.slane %v700, 0
    %v708 = vunpack.c.l.b16 %v695
    %v709 = vunpack.c.l.b16 %v696
    %v710 = vunpack.c.l.b16 %v697
    %v711 = vunpack.c.l.b16 %v698
    %v712 = vpack.c.b16 %v709, %v708
    %v713 = vpack.c.b16 %v711, %v710
    %v717 = vsel %vm259, %v699, 0
    %719 = vmatpush.bf16.msra.mxu0 0
    %720 = vmatpush.bf16.msra.mxu0 0
    %721 = vmatpush.bf16.msra.mxu0 0
    %722 = vmatpush.bf16.msra.mxu0 0
    %723 = vmatpush.bf16.msra.mxu0 0
    %724 = vmatpush.bf16.msra.mxu0 0
    %725 = vmatpush.bf16.msra.mxu0 %v713
    %726 = vmatpush.bf16.msra.mxu0 %v712
    %727 = vmatmul.bf16.gmra.mxu0 %v717
    %v728 = vpop.f32.mrf.mxu0
    %v729 = vadd.f32 %v702, %v728
    %v730 = vpop.f32.mrf.mxu0
    %v731 = vadd.f32 %v702, %v730
    %732 = vdwg.mxu0
    %v733 = vmul.f32 %v729, 0.5
    %v734 = vmul.f32 %v731, 0.5
    %v735 = vmul.f32 %v729, 0.044715
    %v736 = vmul.f32 %v731, 0.044715
    %v737 = vmul.f32 %v735, %v729
    %v738 = vmul.f32 %v736, %v731
    %v739 = vmul.f32 %v737, %v729
    %v740 = vmul.f32 %v738, %v731
    %v741 = vadd.f32 %v729, %v739
    %v742 = vadd.f32 %v731, %v740
    %v743 = vmul.f32 %v741, 0.7978846
    %v744 = vmul.f32 %v742, 0.7978846
    %v745 = vtanh.pop %v743
    %v746 = vtanh.pop %v744
    %v747 = vadd.f32 %v745, 1.0
    %v748 = vadd.f32 %v746, 1.0
    %v749 = vmul.f32 %v733, %v747
    %v750 = vmul.f32 %v734, %v748
    %v751 = vld [vmem:[%s12] sm:$0xf]
    %v752 = vld [vmem:[%s12 + $0x4] sm:$0xf]
    %v753 = vld [vmem:[%s12 + $0x8] sm:$0xf]
    %v754 = vld [vmem:[%s12 + $0xc] sm:$0xf]
    %v755 = vld [vmem:[%s12 + $0x10] sm:$0xf]
    %v756 = vld [vmem:[%s12 + $0x14] sm:$0xf]
    %v757 = vld [vmem:[%s12 + $0x18] sm:$0xf]
    %v758 = vld [vmem:[%s12 + $0x1c] sm:$0xf]
    %v759 = vld [vmem:[%s12 + $0x20] sm:$0xf]
    %v760 = vld [vmem:[%s12 + $0x24] sm:$0xf]
    %v761 = vld [vmem:[%s12 + $0x28] sm:$0xf]
    %v762 = vld [vmem:[%s12 + $0x2c] sm:$0xf]
    %v763 = vld [vmem:[%s12 + $0x30] sm:$0xf]
    %v764 = vld [vmem:[%s12 + $0x34] sm:$0xf]
    %v765 = vld [vmem:[%s12 + $0x38] sm:$0xf]
    %v766 = vld [vmem:[%s12 + $0x3c] sm:$0xf]
    %v767 = vpack.c.bf16 %v750, %v749
    %v784 = vunpack.c.l.b16 %v751
    %v785 = vunpack.c.l.b16 %v752
    %v786 = vunpack.c.l.b16 %v753
    %v787 = vunpack.c.l.b16 %v754
    %v788 = vunpack.c.l.b16 %v755
    %v789 = vunpack.c.l.b16 %v756
    %v790 = vunpack.c.l.b16 %v757
    %v791 = vunpack.c.l.b16 %v758
    %v792 = vunpack.c.l.b16 %v759
    %v793 = vunpack.c.l.b16 %v760
    %v794 = vunpack.c.l.b16 %v761
    %v795 = vunpack.c.l.b16 %v762
    %v796 = vunpack.c.l.b16 %v763
    %v797 = vunpack.c.l.b16 %v764
    %v798 = vunpack.c.l.b16 %v765
    %v799 = vunpack.c.l.b16 %v766
    %v800 = vpack.c.b16 %v785, %v784
    %v801 = vpack.c.b16 %v787, %v786
    %v802 = vpack.c.b16 %v789, %v788
    %v803 = vpack.c.b16 %v791, %v790
    %v804 = vpack.c.b16 %v793, %v792
    %v805 = vpack.c.b16 %v795, %v794
    %v806 = vpack.c.b16 %v797, %v796
    %v807 = vpack.c.b16 %v799, %v798
    %816 = vmatpush.bf16.msra.mxu0 %v807
    %817 = vmatpush.bf16.msra.mxu0 %v806
    %818 = vmatpush.bf16.msra.mxu0 %v805
    %819 = vmatpush.bf16.msra.mxu0 %v804
    %820 = vmatpush.bf16.msra.mxu0 %v803
    %821 = vmatpush.bf16.msra.mxu0 %v802
    %822 = vmatpush.bf16.msra.mxu0 %v801
    %823 = vmatpush.bf16.msra.mxu0 %v800
    %824 = vmatmul.bf16.gmra.mxu0 %v767
    %v825 = vpop.f32.mrf.mxu0
    %v826 = vadd.f32 0.0, %v825
    %v827 = vpop.f32.mrf.mxu0
    %v828 = vadd.f32 0.0, %v827
    %829 = vdwg.mxu0
    %v830 = vadd.f32 %v642, %v826
    %v831 = vadd.f32 %v643, %v828
    %v832 = vld [vmem:[%s13] sm:$0x1]
    %v834 = vperm.slane %v832, 0
    %v836 = vadd.f32 %v830, %v834
    %v837 = vadd.f32 %v831, %v834
    %s838 = scalar_lea.vmem %s4, 2
    %v839 = vld [vmem:[%s838] sm:$0x3]
    %v840 = vsel %vm259, %v836, 0.0
    %841 = vadd.xlane.f32.xlu0 %v840
    %v842 = vpop.xlane.xlu0 %841
    %v843 = vsel %vm259, %v837, 0.0
    %844 = vadd.xlane.f32.xlu0 %v843
    %v845 = vpop.xlane.xlu0 %844
    %v846 = vmul.f32 %v842, %v272
    %v847 = vmul.f32 %v845, %v272
    %v848 = vsub.f32 %v836, %v846
    %v849 = vsub.f32 %v837, %v847
    %v850 = vmul.f32 %v848, %v848
    %v851 = vmul.f32 %v849, %v849
    %v852 = vsel %vm259, %v850, 0.0
    %853 = vadd.xlane.f32.xlu0 %v852
    %v854 = vpop.xlane.xlu0 %853
    %v855 = vsel %vm259, %v851, 0.0
    %856 = vadd.xlane.f32.xlu0 %v855
    %v857 = vpop.xlane.xlu0 %856
    %v858 = vmul.f32 %v854, %v272
    %v859 = vmul.f32 %v857, %v272
    %v860 = vadd.f32 %v858, 1e-05
    %v861 = vadd.f32 %v859, 1e-05
    %v862 = vrsqrt.pop %v860
    %v863 = vmul.f32 %v862, %v860
    %v864 = vmul.f32 %v863, %v862
    %v865 = vmul.f32 0.5, %v864
    %v866 = vsub.f32 1.5, %v865
    %v867 = vmul.f32 %v862, %v866
    %vm868 = vweird.f32 %v860
    %vm869 = vweird.f32 %v862
    %vm870 = vmor %vm868, %vm869
    %v871 = vsel %vm870, %v862, %v867
    %v872 = vrsqrt.pop %v861
    %v873 = vmul.f32 %v872, %v861
    %v874 = vmul.f32 %v873, %v872
    %v875 = vmul.f32 0.5, %v874
    %v876 = vsub.f32 1.5, %v875
    %v877 = vmul.f32 %v872, %v876
    %vm878 = vweird.f32 %v861
    %vm879 = vweird.f32 %v872
    %vm880 = vmor %vm878, %vm879
    %v881 = vsel %vm880, %v872, %v877
    %v882 = vmul.f32 %v848, %v871
    %v883 = vmul.f32 %v849, %v881
    %v884 = vperm.slane %v839, 0
    %v885 = vmul.f32 %v882, %v884
    %v886 = vmul.f32 %v883, %v884
    %v887 = vperm.slane %v839, 1
    %v888 = vadd.f32 %v885, %v887
    %v889 = vadd.f32 %v886, %v887
    %s890 = scalar_lea.vmem %s5, 16
    %v891 = vld [vmem:[%s890] sm:$0xf]
    %v892 = vld [vmem:[%s890 + $0x4] sm:$0xf]
    %v893 = vld [vmem:[%s890 + $0x8] sm:$0xf]
    %v894 = vld [vmem:[%s890 + $0xc] sm:$0xf]
    %v895 = vpack.c.bf16 %v889, %v888
    %s896 = scalar_lea.vmem %s6, 1
    %v897 = vld [vmem:[%s896] sm:$0x1]
    %v899 = vperm.slane %v897, 0
    %v905 = vunpack.c.l.b16 %v891
    %v906 = vunpack.c.l.b16 %v892
    %v907 = vunpack.c.l.b16 %v893
    %v908 = vunpack.c.l.b16 %v894
    %v909 = vpack.c.b16 %v906, %v905
    %v910 = vpack.c.b16 %v908, %v907
    %v914 = vsel %vm259, %v895, 0
    %916 = vmatpush.bf16.msra.mxu0 0
    %917 = vmatpush.bf16.msra.mxu0 0
    %918 = vmatpush.bf16.msra.mxu0 0
    %919 = vmatpush.bf16.msra.mxu0 0
    %920 = vmatpush.bf16.msra.mxu0 0
    %921 = vmatpush.bf16.msra.mxu0 0
    %922 = vmatpush.bf16.msra.mxu0 %v910
    %923 = vmatpush.bf16.msra.mxu0 %v909
    %924 = vmatmul.bf16.gmra.mxu0 %v914
    %v925 = vpop.f32.mrf.mxu0
    %v926 = vadd.f32 %v899, %v925
    %v927 = vpop.f32.mrf.mxu0
    %v928 = vadd.f32 %v899, %v927
    %929 = vdwg.mxu0
    %932 = vrot.lane.b32.xlu0 %v926, 96
    %v933 = vpop.permute.xlu0 %932
    %934 = vrot.lane.b32.xlu0 %v928, 96
    %v935 = vpop.permute.xlu0 %934
    %938 = vxpose.xlu0.b32.start [1/16] %v933, 128
    %939 = vxpose.xlu0.b32.cont [2/16] %v935, 128
    %940 = vxpose.xlu0.b32.cont [3/16] 0.0, 128
    %941 = vxpose.xlu0.b32.cont [4/16] 0.0, 128
    %942 = vxpose.xlu0.b32.cont [5/16] 0.0, 128
    %943 = vxpose.xlu0.b32.cont [6/16] 0.0, 128
    %944 = vxpose.xlu0.b32.cont [7/16] 0.0, 128
    %945 = vxpose.xlu0.b32.cont [8/16] 0.0, 128
    %946 = vxpose.xlu0.b32.cont [9/16] 0.0, 128
    %947 = vxpose.xlu0.b32.cont [10/16] 0.0, 128
    %948 = vxpose.xlu0.b32.cont [11/16] 0.0, 128
    %949 = vxpose.xlu0.b32.cont [12/16] 0.0, 128
    %950 = vxpose.xlu0.b32.cont [13/16] 0.0, 128
    %951 = vxpose.xlu0.b32.cont [14/16] 0.0, 128
    %952 = vxpose.xlu0.b32.cont [15/16] 0.0, 128
    %953 = vxpose.xlu0.b32.end [16/16] 0.0, 128
    %v954 = vpop.trf.xlu0
    %v955 = vpop.trf.xlu0
    %v956 = vpop.trf.xlu0
    %v957 = vpop.trf.xlu0
    %v958 = vpop.trf.xlu0
    %v959 = vpop.trf.xlu0
    %v960 = vpop.trf.xlu0
    %v961 = vpop.trf.xlu0
    %v962 = vpop.trf.xlu0
    %v963 = vpop.trf.xlu0
    %v964 = vpop.trf.xlu0
    %v965 = vpop.trf.xlu0
    %v966 = vpop.trf.xlu0
    %v967 = vpop.trf.xlu0
    %v968 = vpop.trf.xlu0
    %v969 = vpop.trf.xlu0
    %v970 = vmul.f32 %v926, %v242
    %v971 = vmul.f32 %v928, %v243
    %v972 = vmul.f32 %v926, %v244
    %v973 = vmul.f32 %v928, %v245
    %v974 = vmul.f32 %v926, %v246
    %v975 = vmul.f32 %v928, %v247
    %v976 = vmul.f32 %v926, %v248
    %v977 = vmul.f32 %v928, %v249
    %v978 = vpack.c.bf16 %v971, %v970
    %v979 = vpack.c.bf16 %v973, %v972
    %v980 = vpack.c.bf16 %v975, %v974
    %v981 = vpack.c.bf16 %v977, %v976
    %v982 = vpack.c.bf16 %v955, %v954
    %v983 = vpack.c.bf16 %v957, %v956
    %v985 = vsel %vm259, %v978, 0
    %v988 = vsel %vm259, %v979, 0
    %v991 = vsel %vm259, %v980, 0
    %v994 = vsel %vm259, %v981, 0
    %996 = vmatpush.bf16.msra.mxu0 0
    %997 = vmatpush.bf16.msra.mxu0 0
    %998 = vmatpush.bf16.msra.mxu0 0
    %999 = vmatpush.bf16.msra.mxu0 0
    %1000 = vmatpush.bf16.msra.mxu0 0
    %1001 = vmatpush.bf16.msra.mxu0 0
    %1002 = vmatpush.bf16.msra.mxu0 %v983
    %1003 = vmatpush.bf16.msra.mxu0 %v982
    %1004 = vmatmul.bf16.gmra.mxu0 %v985
    %v1005 = vpop.f32.mrf.mxu0
    %v1006 = vadd.f32 %v250, %v1005
    %v1007 = vpop.f32.mrf.mxu0
    %v1008 = vadd.f32 %v251, %v1007
    %1009 = vmatmul.bf16.gmra.mxu0 %v988
    %v1010 = vpop.f32.mrf.mxu0
    %v1011 = vadd.f32 %v252, %v1010
    %v1012 = vpop.f32.mrf.mxu0
    %v1013 = vadd.f32 %v253, %v1012
    %1014 = vmatmul.bf16.gmra.mxu0 %v991
    %v1015 = vpop.f32.mrf.mxu0
    %v1016 = vadd.f32 %v254, %v1015
    %v1017 = vpop.f32.mrf.mxu0
    %v1018 = vadd.f32 %v255, %v1017
    %1019 = vmatmul.bf16.gmra.mxu0 %v994
    %v1020 = vpop.f32.mrf.mxu0
    %v1021 = vadd.f32 %v256, %v1020
    %v1022 = vpop.f32.mrf.mxu0
    %v1023 = vadd.f32 %v257, %v1022
    %1024 = vdwg.mxu0
    %v1025 = vsel %vm210, %v1006, -inf
    %1026 = vmax.xlane.f32.xlu0 %v1025
    %v1027 = vpop.xlane.xlu0 %1026
    %v1028 = vsel %vm210, %v1008, -inf
    %1029 = vmax.xlane.f32.xlu0 %v1028
    %v1030 = vpop.xlane.xlu0 %1029
    %v1031 = vsel %vm210, %v1011, -inf
    %1032 = vmax.xlane.f32.xlu0 %v1031
    %v1033 = vpop.xlane.xlu0 %1032
    %v1034 = vsel %vm210, %v1013, -inf
    %1035 = vmax.xlane.f32.xlu0 %v1034
    %v1036 = vpop.xlane.xlu0 %1035
    %v1037 = vsel %vm210, %v1016, -inf
    %1038 = vmax.xlane.f32.xlu0 %v1037
    %v1039 = vpop.xlane.xlu0 %1038
    %v1040 = vsel %vm210, %v1018, -inf
    %1041 = vmax.xlane.f32.xlu0 %v1040
    %v1042 = vpop.xlane.xlu0 %1041
    %v1043 = vsel %vm210, %v1021, -inf
    %1044 = vmax.xlane.f32.xlu0 %v1043
    %v1045 = vpop.xlane.xlu0 %1044
    %v1046 = vsel %vm210, %v1023, -inf
    %1047 = vmax.xlane.f32.xlu0 %v1046
    %v1048 = vpop.xlane.xlu0 %1047
    %v1049 = vsub.f32 %v1006, %v1027
    %v1050 = vsub.f32 %v1008, %v1030
    %v1051 = vsub.f32 %v1011, %v1033
    %v1052 = vsub.f32 %v1013, %v1036
    %v1053 = vsub.f32 %v1016, %v1039
    %v1054 = vsub.f32 %v1018, %v1042
    %v1055 = vsub.f32 %v1021, %v1045
    %v1056 = vsub.f32 %v1023, %v1048
    %v1057 = vmul.f32 %v1049, 1.442695
    %v1058 = vpow.pop %v1057
    %v1059 = vmul.f32 %v1050, 1.442695
    %v1060 = vpow.pop %v1059
    %v1061 = vmul.f32 %v1051, 1.442695
    %v1062 = vpow.pop %v1061
    %v1063 = vmul.f32 %v1052, 1.442695
    %v1064 = vpow.pop %v1063
    %v1065 = vmul.f32 %v1053, 1.442695
    %v1066 = vpow.pop %v1065
    %v1067 = vmul.f32 %v1054, 1.442695
    %v1068 = vpow.pop %v1067
    %v1069 = vmul.f32 %v1055, 1.442695
    %v1070 = vpow.pop %v1069
    %v1071 = vmul.f32 %v1056, 1.442695
    %v1072 = vpow.pop %v1071
    %v1073 = vsel %vm210, %v1058, 0.0
    %1074 = vadd.xlane.f32.xlu0 %v1073
    %v1075 = vpop.xlane.xlu0 %1074
    %v1076 = vsel %vm210, %v1060, 0.0
    %1077 = vadd.xlane.f32.xlu0 %v1076
    %v1078 = vpop.xlane.xlu0 %1077
    %v1079 = vsel %vm210, %v1062, 0.0
    %1080 = vadd.xlane.f32.xlu0 %v1079
    %v1081 = vpop.xlane.xlu0 %1080
    %v1082 = vsel %vm210, %v1064, 0.0
    %1083 = vadd.xlane.f32.xlu0 %v1082
    %v1084 = vpop.xlane.xlu0 %1083
    %v1085 = vsel %vm210, %v1066, 0.0
    %1086 = vadd.xlane.f32.xlu0 %v1085
    %v1087 = vpop.xlane.xlu0 %1086
    %v1088 = vsel %vm210, %v1068, 0.0
    %1089 = vadd.xlane.f32.xlu0 %v1088
    %v1090 = vpop.xlane.xlu0 %1089
    %v1091 = vsel %vm210, %v1070, 0.0
    %1092 = vadd.xlane.f32.xlu0 %v1091
    %v1093 = vpop.xlane.xlu0 %1092
    %v1094 = vsel %vm210, %v1072, 0.0
    %1095 = vadd.xlane.f32.xlu0 %v1094
    %v1096 = vpop.xlane.xlu0 %1095
    %v1097 = vrcp.pop %v1075
    %v1098 = vrcp.pop %v1078
    %v1099 = vrcp.pop %v1081
    %v1100 = vrcp.pop %v1084
    %v1101 = vrcp.pop %v1087
    %v1102 = vrcp.pop %v1090
    %v1103 = vrcp.pop %v1093
    %v1104 = vrcp.pop %v1096
    %v1105 = vmul.f32 %v1058, %v1097
    %v1106 = vmul.f32 %v1060, %v1098
    %v1107 = vmul.f32 %v1062, %v1099
    %v1108 = vmul.f32 %v1064, %v1100
    %v1109 = vmul.f32 %v1066, %v1101
    %v1110 = vmul.f32 %v1068, %v1102
    %v1111 = vmul.f32 %v1070, %v1103
    %v1112 = vmul.f32 %v1072, %v1104
    %v1113 = vpack.c.bf16 %v1106, %v1105
    %v1114 = vpack.c.bf16 %v1108, %v1107
    %v1115 = vpack.c.bf16 %v1110, %v1109
    %v1116 = vpack.c.bf16 %v1112, %v1111
    %v1117 = vpack.c.bf16 %v928, %v926
    %1119 = vrot.lane.b32.xlu0 %v1117, 64
    %v1120 = vpop.permute.xlu0 %1119
    %v1123 = vsel %vm210, %v1113, 0
    %v1126 = vsel %vm210, %v1114, 0
    %v1129 = vsel %vm210, %v1115, 0
    %v1132 = vsel %vm210, %v1116, 0
    %1134 = vmatpush.bf16.msra.mxu0 0
    %1135 = vmatpush.bf16.msra.mxu0 0
    %1136 = vmatpush.bf16.msra.mxu0 0
    %1137 = vmatpush.bf16.msra.mxu0 0
    %1138 = vmatpush.bf16.msra.mxu0 0
    %1139 = vmatpush.bf16.msra.mxu0 0
    %1140 = vmatpush.bf16.msra.mxu0 0
    %1141 = vmatpush.bf16.msra.mxu0 %v1120
    %1142 = vmatmul.bf16.gmra.mxu0 %v1123
    %v1143 = vpop.f32.mrf.mxu0
    %v1144 = vadd.f32 0.0, %v1143
    %v1145 = vpop.f32.mrf.mxu0
    %v1146 = vadd.f32 0.0, %v1145
    %1147 = vmatmul.bf16.gmra.mxu0 %v1126
    %v1148 = vpop.f32.mrf.mxu0
    %v1149 = vadd.f32 0.0, %v1148
    %v1150 = vpop.f32.mrf.mxu0
    %v1151 = vadd.f32 0.0, %v1150
    %1152 = vmatmul.bf16.gmra.mxu0 %v1129
    %v1153 = vpop.f32.mrf.mxu0
    %v1154 = vadd.f32 0.0, %v1153
    %v1155 = vpop.f32.mrf.mxu0
    %v1156 = vadd.f32 0.0, %v1155
    %1157 = vmatmul.bf16.gmra.mxu0 %v1132
    %v1158 = vpop.f32.mrf.mxu0
    %v1159 = vadd.f32 0.0, %v1158
    %v1160 = vpop.f32.mrf.mxu0
    %v1161 = vadd.f32 0.0, %v1160
    %1162 = vdwg.mxu0
    %v1163 = vmul.f32 %v1144, %v242
    %v1164 = vmul.f32 %v1146, %v243
    %v1165 = vmul.f32 %v1149, %v244
    %v1166 = vmul.f32 %v1151, %v245
    %v1167 = vmul.f32 %v1154, %v246
    %v1168 = vmul.f32 %v1156, %v247
    %v1169 = vmul.f32 %v1159, %v248
    %v1170 = vmul.f32 %v1161, %v249
    %v1171 = vadd.f32 %v1163, %v1165
    %v1172 = vadd.f32 %v1164, %v1166
    %v1173 = vadd.f32 %v1171, %v1167
    %v1174 = vadd.f32 %v1172, %v1168
    %v1175 = vadd.f32 %v1173, %v1169
    %v1176 = vadd.f32 %v1174, %v1170
    %s1177 = scalar_lea.vmem %s7, 16
    %v1178 = vld [vmem:[%s1177] sm:$0xf]
    %v1179 = vld [vmem:[%s1177 + $0x4] sm:$0xf]
    %v1180 = vld [vmem:[%s1177 + $0x8] sm:$0xf]
    %v1181 = vld [vmem:[%s1177 + $0xc] sm:$0xf]
    %v1182 = vpack.c.bf16 %v1176, %v1175
    %v1187 = vunpack.c.l.b16 %v1178
    %v1188 = vunpack.c.l.b16 %v1179
    %v1189 = vunpack.c.l.b16 %v1180
    %v1190 = vunpack.c.l.b16 %v1181
    %v1191 = vpack.c.b16 %v1188, %v1187
    %v1192 = vpack.c.b16 %v1190, %v1189
    %v1196 = vsel %vm259, %v1182, 0
    %1198 = vmatpush.bf16.msra.mxu0 0
    %1199 = vmatpush.bf16.msra.mxu0 0
    %1200 = vmatpush.bf16.msra.mxu0 0
    %1201 = vmatpush.bf16.msra.mxu0 0
    %1202 = vmatpush.bf16.msra.mxu0 0
    %1203 = vmatpush.bf16.msra.mxu0 0
    %1204 = vmatpush.bf16.msra.mxu0 %v1192
    %1205 = vmatpush.bf16.msra.mxu0 %v1191
    %1206 = vmatmul.bf16.gmra.mxu0 %v1196
    %v1207 = vpop.f32.mrf.mxu0
    %v1208 = vadd.f32 0.0, %v1207
    %v1209 = vpop.f32.mrf.mxu0
    %v1210 = vadd.f32 0.0, %v1209
    %1211 = vdwg.mxu0
    %v1212 = vadd.f32 %v836, %v1208
    %v1213 = vadd.f32 %v837, %v1210
    %s1214 = scalar_lea.vmem [#allocation2], 1
    %v1215 = vld [vmem:[%s1214] sm:$0x1]
    %v1217 = vperm.slane %v1215, 0
    %v1219 = vadd.f32 %v1212, %v1217
    %v1220 = vadd.f32 %v1213, %v1217
    %s1221 = scalar_lea.vmem %s9, 2
    %v1222 = vld [vmem:[%s1221] sm:$0x3]
    %v1223 = vsel %vm259, %v1219, 0.0
    %1224 = vadd.xlane.f32.xlu0 %v1223
    %v1225 = vpop.xlane.xlu0 %1224
    %v1226 = vsel %vm259, %v1220, 0.0
    %1227 = vadd.xlane.f32.xlu0 %v1226
    %v1228 = vpop.xlane.xlu0 %1227
    %v1229 = vmul.f32 %v1225, %v272
    %v1230 = vmul.f32 %v1228, %v272
    %v1231 = vsub.f32 %v1219, %v1229
    %v1232 = vsub.f32 %v1220, %v1230
    %v1233 = vmul.f32 %v1231, %v1231
    %v1234 = vmul.f32 %v1232, %v1232
    %v1235 = vsel %vm259, %v1233, 0.0
    %1236 = vadd.xlane.f32.xlu0 %v1235
    %v1237 = vpop.xlane.xlu0 %1236
    %v1238 = vsel %vm259, %v1234, 0.0
    %1239 = vadd.xlane.f32.xlu0 %v1238
    %v1240 = vpop.xlane.xlu0 %1239
    %v1241 = vmul.f32 %v1237, %v272
    %v1242 = vmul.f32 %v1240, %v272
    %v1243 = vadd.f32 %v1241, 1e-05
    %v1244 = vadd.f32 %v1242, 1e-05
    %v1245 = vrsqrt.pop %v1243
    %v1246 = vmul.f32 %v1245, %v1243
    %v1247 = vmul.f32 %v1246, %v1245
    %v1248 = vmul.f32 0.5, %v1247
    %v1249 = vsub.f32 1.5, %v1248
    %v1250 = vmul.f32 %v1245, %v1249
    %vm1251 = vweird.f32 %v1243
    %vm1252 = vweird.f32 %v1245
    %vm1253 = vmor %vm1251, %vm1252
    %v1254 = vsel %vm1253, %v1245, %v1250
    %v1255 = vrsqrt.pop %v1244
    %v1256 = vmul.f32 %v1255, %v1244
    %v1257 = vmul.f32 %v1256, %v1255
    %v1258 = vmul.f32 0.5, %v1257
    %v1259 = vsub.f32 1.5, %v1258
    %v1260 = vmul.f32 %v1255, %v1259
    %vm1261 = vweird.f32 %v1244
    %vm1262 = vweird.f32 %v1255
    %vm1263 = vmor %vm1261, %vm1262
    %v1264 = vsel %vm1263, %v1255, %v1260
    %v1265 = vmul.f32 %v1231, %v1254
    %v1266 = vmul.f32 %v1232, %v1264
    %v1267 = vperm.slane %v1222, 0
    %v1268 = vmul.f32 %v1265, %v1267
    %v1269 = vmul.f32 %v1266, %v1267
    %v1270 = vperm.slane %v1222, 1
    %v1271 = vadd.f32 %v1268, %v1270
    %v1272 = vadd.f32 %v1269, %v1270
    %s1273 = scalar_lea.vmem %s10, 16
    %v1274 = vld [vmem:[%s1273] sm:$0xf]
    %v1275 = vld [vmem:[%s1273 + $0x4] sm:$0xf]
    %v1276 = vld [vmem:[%s1273 + $0x8] sm:$0xf]
    %v1277 = vld [vmem:[%s1273 + $0xc] sm:$0xf]
    %v1278 = vpack.c.bf16 %v1272, %v1271
    %s1279 = scalar_lea.vmem [#allocation5], 1
    %v1280 = vld [vmem:[%s1279] sm:$0x1]
    %v1282 = vperm.slane %v1280, 0
    %v1288 = vunpack.c.l.b16 %v1274
    %v1289 = vunpack.c.l.b16 %v1275
    %v1290 = vunpack.c.l.b16 %v1276
    %v1291 = vunpack.c.l.b16 %v1277
    %v1292 = vpack.c.b16 %v1289, %v1288
    %v1293 = vpack.c.b16 %v1291, %v1290
    %v1297 = vsel %vm259, %v1278, 0
    %1299 = vmatpush.bf16.msra.mxu0 0
    %1300 = vmatpush.bf16.msra.mxu0 0
    %1301 = vmatpush.bf16.msra.mxu0 0
    %1302 = vmatpush.bf16.msra.mxu0 0
    %1303 = vmatpush.bf16.msra.mxu0 0
    %1304 = vmatpush.bf16.msra.mxu0 0
    %1305 = vmatpush.bf16.msra.mxu0 %v1293
    %1306 = vmatpush.bf16.msra.mxu0 %v1292
    %1307 = vmatmul.bf16.gmra.mxu0 %v1297
    %v1308 = vpop.f32.mrf.mxu0
    %v1309 = vadd.f32 %v1282, %v1308
    %v1310 = vpop.f32.mrf.mxu0
    %v1311 = vadd.f32 %v1282, %v1310
    %1312 = vdwg.mxu0
    %v1313 = vmul.f32 %v1309, 0.5
    %v1314 = vmul.f32 %v1311, 0.5
    %v1315 = vmul.f32 %v1309, 0.044715
    %v1316 = vmul.f32 %v1311, 0.044715
    %v1317 = vmul.f32 %v1315, %v1309
    %v1318 = vmul.f32 %v1316, %v1311
    %v1319 = vmul.f32 %v1317, %v1309
    %v1320 = vmul.f32 %v1318, %v1311
    %v1321 = vadd.f32 %v1309, %v1319
    %v1322 = vadd.f32 %v1311, %v1320
    %v1323 = vmul.f32 %v1321, 0.7978846
    %v1324 = vmul.f32 %v1322, 0.7978846
    %v1325 = vtanh.pop %v1323
    %v1326 = vtanh.pop %v1324
    %v1327 = vadd.f32 %v1325, 1.0
    %v1328 = vadd.f32 %v1326, 1.0
    %v1329 = vmul.f32 %v1313, %v1327
    %v1330 = vmul.f32 %v1314, %v1328
    %s1331 = scalar_lea.vmem %s12, 64
    %v1332 = vld [vmem:[%s1331] sm:$0xf]
    %v1333 = vld [vmem:[%s1331 + $0x4] sm:$0xf]
    %v1334 = vld [vmem:[%s1331 + $0x8] sm:$0xf]
    %v1335 = vld [vmem:[%s1331 + $0xc] sm:$0xf]
    %v1336 = vld [vmem:[%s1331 + $0x10] sm:$0xf]
    %v1337 = vld [vmem:[%s1331 + $0x14] sm:$0xf]
    %v1338 = vld [vmem:[%s1331 + $0x18] sm:$0xf]
    %v1339 = vld [vmem:[%s1331 + $0x1c] sm:$0xf]
    %v1340 = vld [vmem:[%s1331 + $0x20] sm:$0xf]
    %v1341 = vld [vmem:[%s1331 + $0x24] sm:$0xf]
    %v1342 = vld [vmem:[%s1331 + $0x28] sm:$0xf]
    %v1343 = vld [vmem:[%s1331 + $0x2c] sm:$0xf]
    %v1344 = vld [vmem:[%s1331 + $0x30] sm:$0xf]
    %v1345 = vld [vmem:[%s1331 + $0x34] sm:$0xf]
    %v1346 = vld [vmem:[%s1331 + $0x38] sm:$0xf]
    %v1347 = vld [vmem:[%s1331 + $0x3c] sm:$0xf]
    %v1348 = vpack.c.bf16 %v1330, %v1329
    %v1365 = vunpack.c.l.b16 %v1332
    %v1366 = vunpack.c.l.b16 %v1333
    %v1367 = vunpack.c.l.b16 %v1334
    %v1368 = vunpack.c.l.b16 %v1335
    %v1369 = vunpack.c.l.b16 %v1336
    %v1370 = vunpack.c.l.b16 %v1337
    %v1371 = vunpack.c.l.b16 %v1338
    %v1372 = vunpack.c.l.b16 %v1339
    %v1373 = vunpack.c.l.b16 %v1340
    %v1374 = vunpack.c.l.b16 %v1341
    %v1375 = vunpack.c.l.b16 %v1342
    %v1376 = vunpack.c.l.b16 %v1343
    %v1377 = vunpack.c.l.b16 %v1344
    %v1378 = vunpack.c.l.b16 %v1345
    %v1379 = vunpack.c.l.b16 %v1346
    %v1380 = vunpack.c.l.b16 %v1347
    %v1381 = vpack.c.b16 %v1366, %v1365
    %v1382 = vpack.c.b16 %v1368, %v1367
    %v1383 = vpack.c.b16 %v1370, %v1369
    %v1384 = vpack.c.b16 %v1372, %v1371
    %v1385 = vpack.c.b16 %v1374, %v1373
    %v1386 = vpack.c.b16 %v1376, %v1375
    %v1387 = vpack.c.b16 %v1378, %v1377
    %v1388 = vpack.c.b16 %v1380, %v1379
    %1397 = vmatpush.bf16.msra.mxu0 %v1388
    %1398 = vmatpush.bf16.msra.mxu0 %v1387
    %1399 = vmatpush.bf16.msra.mxu0 %v1386
    %1400 = vmatpush.bf16.msra.mxu0 %v1385
    %1401 = vmatpush.bf16.msra.mxu0 %v1384
    %1402 = vmatpush.bf16.msra.mxu0 %v1383
    %1403 = vmatpush.bf16.msra.mxu0 %v1382
    %1404 = vmatpush.bf16.msra.mxu0 %v1381
    %1405 = vmatmul.bf16.gmra.mxu0 %v1348
    %v1406 = vpop.f32.mrf.mxu0
    %v1407 = vadd.f32 0.0, %v1406
    %v1408 = vpop.f32.mrf.mxu0
    %v1409 = vadd.f32 0.0, %v1408
    %1410 = vdwg.mxu0
    %v1411 = vadd.f32 %v1219, %v1407
    %v1412 = vadd.f32 %v1220, %v1409
    %s1413 = scalar_lea.vmem %s13, 1
    %v1414 = vld [vmem:[%s1413] sm:$0x1]
    %v1416 = vperm.slane %v1414, 0
    %v1418 = vadd.f32 %v1411, %v1416
    %v1419 = vadd.f32 %v1412, %v1416
    %v1420 = vld [vmem:[%s14] sm:$0x3]
    %v1421 = vsel %vm259, %v1418, 0.0
    %1422 = vadd.xlane.f32.xlu0 %v1421
    %v1423 = vpop.xlane.xlu0 %1422
    %v1424 = vsel %vm259, %v1419, 0.0
    %1425 = vadd.xlane.f32.xlu0 %v1424
    %v1426 = vpop.xlane.xlu0 %1425
    %v1427 = vmul.f32 %v1423, %v272
    %v1428 = vmul.f32 %v1426, %v272
    %v1429 = vsub.f32 %v1418, %v1427
    %v1430 = vsub.f32 %v1419, %v1428
    %v1431 = vmul.f32 %v1429, %v1429
    %v1432 = vmul.f32 %v1430, %v1430
    %v1433 = vsel %vm259, %v1431, 0.0
    %1434 = vadd.xlane.f32.xlu0 %v1433
    %v1435 = vpop.xlane.xlu0 %1434
    %v1436 = vsel %vm259, %v1432, 0.0
    %1437 = vadd.xlane.f32.xlu0 %v1436
    %v1438 = vpop.xlane.xlu0 %1437
    %v1439 = vmul.f32 %v1435, %v272
    %v1440 = vmul.f32 %v1438, %v272
    %v1441 = vadd.f32 %v1439, 1e-05
    %v1442 = vadd.f32 %v1440, 1e-05
    %v1443 = vrsqrt.pop %v1441
    %v1444 = vmul.f32 %v1443, %v1441
    %v1445 = vmul.f32 %v1444, %v1443
    %v1446 = vmul.f32 0.5, %v1445
    %v1447 = vsub.f32 1.5, %v1446
    %v1448 = vmul.f32 %v1443, %v1447
    %vm1449 = vweird.f32 %v1441
    %vm1450 = vweird.f32 %v1443
    %vm1451 = vmor %vm1449, %vm1450
    %v1452 = vsel %vm1451, %v1443, %v1448
    %v1453 = vrsqrt.pop %v1442
    %v1454 = vmul.f32 %v1453, %v1442
    %v1455 = vmul.f32 %v1454, %v1453
    %v1456 = vmul.f32 0.5, %v1455
    %v1457 = vsub.f32 1.5, %v1456
    %v1458 = vmul.f32 %v1453, %v1457
    %vm1459 = vweird.f32 %v1442
    %vm1460 = vweird.f32 %v1453
    %vm1461 = vmor %vm1459, %vm1460
    %v1462 = vsel %vm1461, %v1453, %v1458
    %v1463 = vmul.f32 %v1429, %v1452
    %v1464 = vmul.f32 %v1430, %v1462
    %v1465 = vperm.slane %v1420, 0
    %v1466 = vmul.f32 %v1463, %v1465
    %v1467 = vmul.f32 %v1464, %v1465
    %v1468 = vperm.slane %v1420, 1
    %v1469 = vadd.f32 %v1466, %v1468
    %v1470 = vadd.f32 %v1467, %v1468
    %v1471 = vld [vmem:[%s15] sm:$0xf]
    %v1472 = vld [vmem:[%s15 + $0x4] sm:$0xf]
    %v1473 = vld [vmem:[%s15 + $0x8] sm:$0xf]
    %v1474 = vld [vmem:[%s15 + $0xc] sm:$0xf]
    %v1475 = vpack.c.bf16 %v1470, %v1469
    %v1480 = vunpack.c.l.b16 %v1471
    %v1481 = vunpack.c.l.b16 %v1472
    %v1482 = vunpack.c.l.b16 %v1473
    %v1483 = vunpack.c.l.b16 %v1474
    %v1484 = vpack.c.b16 %v1481, %v1480
    %v1485 = vpack.c.b16 %v1483, %v1482
    %v1489 = vsel %vm259, %v1475, 0
    %1491 = vmatpush.bf16.msra.mxu0 0
    %1492 = vmatpush.bf16.msra.mxu0 0
    %1493 = vmatpush.bf16.msra.mxu0 0
    %1494 = vmatpush.bf16.msra.mxu0 0
    %1495 = vmatpush.bf16.msra.mxu0 0
    %1496 = vmatpush.bf16.msra.mxu0 0
    %1497 = vmatpush.bf16.msra.mxu0 %v1485
    %1498 = vmatpush.bf16.msra.mxu0 %v1484
    %1499 = vmatmul.bf16.gmra.mxu0 %v1489
    %v1500 = vpop.f32.mrf.mxu0
    %v1501 = vadd.f32 0.0, %v1500
    %v1502 = vpop.f32.mrf.mxu0
    %v1503 = vadd.f32 0.0, %v1502
    %1504 = vdwg.mxu0
    %1505 = vst [vmem:[#allocation7] sm:$0xff] %v1501
    %1506 = vst [vmem:[#allocation7 + $0x8] sm:$0xff] %v1503
    // Predicated region
    $region74: #{gpt_forward.1} parent=1 // pred_check
      _
    $region75: #{gpt_forward.1} parent=1 // pred_check_branch
      %1508 = sbr.rel (0) target = $region77
    $region76: #{gpt_forward.1} parent=1 // pred_region
      %1510 = vsyncadd [#allocation4], 0
      %s1511 = sshll.u32 [#allocation7], 4
      %s1512 = int_to_ptr.vmem [resolvable:$true] %s1511
      %s1513 = sshll.u32 %s16, 4
      %s1514 = int_to_ptr.hbm [resolvable:$true] %s1513
      %1519 = dma.vmem_to_hbm [thread:$0]  %s1512, 256, %s1514, [#allocation4], 128, 128, 8
    $region77: #{gpt_forward.1} parent=1 // pred_fallthru
      _
    // Predicated region
    $region78: #{gpt_forward.1} parent=1 // pred_check
      _
    $region79: #{gpt_forward.1} parent=1 // pred_check_branch
      %1521 = sbr.rel (0) target = $region81
    $region80: #{gpt_forward.1} parent=1 // pred_region
      %1523 = dma.done [#allocation4], 256
    $region81: #{gpt_forward.1} parent=1 // pred_fallthru
      _
    %1524 = vsyncpa [#allocation3], 1
    %1525 = vsyncpa [#allocation6], 1
    %1526 = vsyncpa [#allocation4], 1

</llo_original>
